<compile_context>
chip_gen: v7x
topology: tpu7x:2x2x1
jax: 0.10.0
libtpu: 0.0.40
codegen_flags: <defaults>
</compile_context>

<pallas_src>
import jax
import jax.numpy as jnp
from jax import lax
from jax.experimental import pallas as pl
from jax.experimental.pallas import tpu as pltpu

LRELU_SLOPE = 0.2
BN_EPS = 1e-5


# ------------------------------ fused kernel --------------------------------

def _make_fused_kernel(N, H, W, Ppad, Cin, midc, outc):
    """Fused residual block for static shapes.

    Activation layout: (channels, flat_padded_pixels) with flat index
    p = n*(H+2)*(W+2) + hp*(W+2) + wp over the zero-padded image, lane-padded
    up to Ppad (multiple of 128).
    """
    Wp = W + 2
    inv_cnt = 1.0 / float(N * H * W)

    def kernel(x_ref, mask_ref, w1_ref, w2_ref, wexp_ref, bn1_ref, bn2_ref,
               o_ref, stack1_ref, stack2_ref):
        x = x_ref[...]          # (Cin, Ppad) f32, zeros on all padding columns
        maskf = mask_ref[...]   # (1, Ppad)   1.0 on real pixels, 0.0 elsewhere

        # identity = conv_expand(x): issue this MXU dot first so it overlaps
        # the XLU roll / stack construction below.  Reuses the resident x tile.
        identity = jnp.dot(wexp_ref[...], x.astype(jnp.bfloat16),
                           preferred_element_type=jnp.float32)

        def build_stack(src, stack_ref, c):
            """Write the 9 lane-rolled tap views of src into stack_ref rows.

            src must have zeros in all padding columns (zero-padding conv
            semantics).  Row block t = kh*3 + kw holds src shifted by the flat
            offset of that tap; wrapped lanes only land on padding columns
            (see roll-validity note at top of file).
            """
            for kh in range(3):
                for kw in range(3):
                    t = kh * 3 + kw
                    off = (kh - 1) * Wp + (kw - 1)
                    if off == 0:
                        shifted = src
                    else:
                        shifted = pltpu.roll(src, (-off) % Ppad, axis=1)
                    stack_ref[t * c:(t + 1) * c, :] = shifted

        def conv3x3(stack_ref, w_ref):
            # One folded MXU dot: (Cout, 9*C) x (9*C, Ppad), bf16 operands,
            # f32 accumulation inside the MXU.
            return jnp.dot(w_ref[...], stack_ref[...].astype(jnp.bfloat16),
                           preferred_element_type=jnp.float32)

        def batchnorm(h, gb_ref):
            # Training-mode BN over real pixels only; single pass, folded affine.
            hm = h * maskf
            s1 = jnp.sum(hm, axis=1, keepdims=True)
            s2 = jnp.sum(hm * hm, axis=1, keepdims=True)
            mean = s1 * inv_cnt
            var = jnp.maximum(s2 * inv_cnt - mean * mean, 0.0)
            scale = gb_ref[:, 0:1] * lax.rsqrt(var + BN_EPS)   # gamma * rsqrt
            shift = gb_ref[:, 1:2] - mean * scale              # beta - mean*scale
            return h * scale + shift

        def lrelu(v):
            return jnp.where(v >= 0.0, v, LRELU_SLOPE * v)

        # h1 = relu1(bn1(conv1(x))); re-zero padding columns so conv2 sees
        # proper zero padding.
        build_stack(x, stack1_ref, Cin)
        h1 = lrelu(batchnorm(conv3x3(stack1_ref, w1_ref), bn1_ref)) * maskf

        # out = tanh(relu2(bn2(conv2(h1)) + identity))
        build_stack(h1, stack2_ref, midc)
        y = batchnorm(conv3x3(stack2_ref, w2_ref), bn2_ref) + identity
        o_ref[...] = jnp.tanh(lrelu(y))

    return kernel


# ------------------------------- wrapper -------------------------------------

def residual_block_forward(x_nchw, params):
    """Forward pass of ResidualBlock. Input/Output: NCHW float32."""
    N, Cin, H, W = x_nchw.shape
    Hp, Wp = H + 2, W + 2
    P = N * Hp * Wp
    Ppad = ((P + 127) // 128) * 128          # lane-dense flattened pixel axis
    midc = params["w1"].shape[0]
    outc = params["w2"].shape[0]

    x = x_nchw.astype(jnp.float32)
    # Zero-pad spatially once (1-pixel halo); channels -> sublanes, pixels -> lanes.
    x_pad = jnp.pad(x, ((0, 0), (0, 0), (1, 1), (1, 1)))
    x_cp = jnp.transpose(x_pad, (1, 0, 2, 3)).reshape(Cin, P)
    x_cp = jnp.pad(x_cp, ((0, 0), (0, Ppad - P)))

    # Validity mask of real (non-padding) pixels on the flattened axis.
    valid = jnp.zeros((N, Hp, Wp), jnp.float32).at[:, 1:H + 1, 1:W + 1].set(1.0)
    mask = jnp.pad(valid.reshape(1, P), ((0, 0), (0, Ppad - P)))

    # Folded conv weights: (O, I, 3, 3) -> (O, 9*I), column index t*I + i with
    # t = kh*3 + kw, matching the in-kernel stack row order.  bf16 for the MXU.
    w1f = jnp.transpose(params["w1"], (0, 2, 3, 1)).reshape(midc, 9 * Cin)
    w2f = jnp.transpose(params["w2"], (0, 2, 3, 1)).reshape(outc, 9 * midc)
    w1f = w1f.astype(jnp.bfloat16)
    w2f = w2f.astype(jnp.bfloat16)
    if params.get("w_expand", None) is not None:
        wexp = params["w_expand"][:, :, 0, 0].astype(jnp.bfloat16)   # (outc, Cin)
    else:
        # inc == outc branch: identity passthrough expressed as a 1x1 identity conv.
        wexp = jnp.eye(outc, Cin, dtype=jnp.bfloat16)

    # BN params packed as (C, 2) = [gamma | beta].
    bn1p = jnp.stack([params["g1"], params["b1"]], axis=1).astype(jnp.float32)
    bn2p = jnp.stack([params["g2"], params["b2"]], axis=1).astype(jnp.float32)

    kernel = _make_fused_kernel(N, H, W, Ppad, Cin, midc, outc)

    flops = 2 * P * (midc * 9 * Cin + outc * 9 * midc + outc * Cin) \
        + 12 * P * (midc + outc)
    transcendentals = P * outc + 2 * (midc + outc)
    bytes_accessed = 4 * (Cin + outc + 1) * Ppad \
        + 2 * (w1f.size + w2f.size + wexp.size) + 4 * (bn1p.size + bn2p.size)

    out2d = pl.pallas_call(
        kernel,
        out_shape=jax.ShapeDtypeStruct((outc, Ppad), jnp.float32),
        grid=(1,),
        in_specs=[
            pl.BlockSpec((Cin, Ppad), lambda i: (0, 0)),
            pl.BlockSpec((1, Ppad), lambda i: (0, 0)),
            pl.BlockSpec((midc, 9 * Cin), lambda i: (0, 0)),
            pl.BlockSpec((outc, 9 * midc), lambda i: (0, 0)),
            pl.BlockSpec((outc, Cin), lambda i: (0, 0)),
            pl.BlockSpec((midc, 2), lambda i: (0, 0)),
            pl.BlockSpec((outc, 2), lambda i: (0, 0)),
        ],
        out_specs=pl.BlockSpec((outc, Ppad), lambda i: (0, 0)),
        scratch_shapes=[
            pltpu.VMEM((9 * Cin, Ppad), jnp.float32),    # conv1 shifted-tap stack
            pltpu.VMEM((9 * midc, Ppad), jnp.float32),   # conv2 shifted-tap stack
        ],
        compiler_params=pltpu.CompilerParams(
            dimension_semantics=("arbitrary",),
            vmem_limit_bytes=32 * 1024 * 1024,
        ),
        cost_estimate=pl.CostEstimate(
            flops=int(flops),
            transcendentals=int(transcendentals),
            bytes_accessed=int(bytes_accessed),
        ),
    )(x_cp, mask, w1f, w2f, wexp, bn1p, bn2p)

    # Drop the flat-lane padding, un-pad spatially, and return NCHW.
    out = out2d[:, :P].reshape(outc, N, Hp, Wp)[:, :, 1:H + 1, 1:W + 1]
    return jnp.transpose(out, (1, 0, 2, 3))


# --------------------------- pure-JAX reference ------------------------------

def _ref_forward(x_nchw, params):
    x = jnp.transpose(x_nchw, (0, 2, 3, 1)).astype(jnp.float32)

    def conv(inp, w_oihw, pad):
        w_hwio = jnp.transpose(w_oihw, (2, 3, 1, 0))
        return lax.conv_general_dilated(
            inp, w_hwio, (1, 1), pad,
            dimension_numbers=("NHWC", "HWIO", "NHWC"))

    def bn(inp, g, b):
        mean = jnp.mean(inp, axis=(0, 1, 2), keepdims=True)
        var = jnp.mean(jnp.square(inp - mean), axis=(0, 1, 2), keepdims=True)
        return (inp - mean) / jnp.sqrt(var + BN_EPS) * g + b

    def lrelu(v):
        return jnp.where(v >= 0.0, v, LRELU_SLOPE * v)

    identity = conv(x, params["w_expand"], "VALID")
    o = lrelu(bn(conv(x, params["w1"], "SAME"), params["g1"], params["b1"]))
    o = bn(conv(o, params["w2"], "SAME"), params["g2"], params["b2"])
    o = jnp.tanh(lrelu(o + identity))
    return jnp.transpose(o, (0, 3, 1, 2))


# ---------------------------------- main -------------------------------------

if __name__ == "__main__":
    inc, outc, scale = 4, 8, 1.0
    midc = int(outc * scale)
    N, H, W = 2, 16, 16

    key = jax.random.PRNGKey(0)
    kx, ke, k1, k2, kg1, kb1, kg2, kb2 = jax.random.split(key, 8)

    x = jax.random.normal(kx, (N, inc, H, W), dtype=jnp.float32)

    params = {
        "w_expand": 0.3 * jax.random.normal(ke, (outc, inc, 1, 1), jnp.float32),
        "w1":       0.3 * jax.random.normal(k1, (midc, inc, 3, 3), jnp.float32),
        "w2":       0.3 * jax.random.normal(k2, (outc, midc, 3, 3), jnp.float32),
        "g1": 1.0 + 0.1 * jax.random.normal(kg1, (midc,), jnp.float32),
        "b1": 0.1 * jax.random.normal(kb1, (midc,), jnp.float32),
        "g2": 1.0 + 0.1 * jax.random.normal(kg2, (outc,), jnp.float32),
        "b2": 0.1 * jax.random.normal(kb2, (outc,), jnp.float32),
    }

    out = jax.jit(residual_block_forward)(x, params)
    out = jax.block_until_ready(out)
    assert out.shape == (N, outc, H, W), out.shape

    # Reference is pure f32; the kernel uses bf16 MXU operands (f32 accumulation,
    # f32 BN/activations), so tolerance is widened to 2e-2 (observed error ~1e-2).
    ref = _ref_forward(x, params)
    assert jnp.allclose(out, ref, atol=2e-2, rtol=2e-2), \
        float(jnp.max(jnp.abs(out - ref)))

    print("KERNEL_OK")
</pallas_src>

<mosaic_0001>
module attributes {stable_mosaic.version = 11 : i64} {
  func.func @kernel(%arg0: i32, %arg1: memref<4x768xf32, #tpu.memory_space<vmem>>, %arg2: memref<1x768xf32, #tpu.memory_space<vmem>>, %arg3: memref<8x36xbf16, #tpu.memory_space<vmem>>, %arg4: memref<8x72xbf16, #tpu.memory_space<vmem>>, %arg5: memref<8x4xbf16, #tpu.memory_space<vmem>>, %arg6: memref<8x2xf32, #tpu.memory_space<vmem>>, %arg7: memref<8x2xf32, #tpu.memory_space<vmem>>, %arg8: memref<8x768xf32, #tpu.memory_space<vmem>>, %arg9: memref<36x768xf32, #tpu.memory_space<vmem>>, %arg10: memref<72x768xf32, #tpu.memory_space<vmem>>) attributes {dimension_semantics = [#tpu.dimension_semantics<arbitrary>], iteration_bounds = array<i64: 1>, scalar_prefetch = 0 : i64, scratch_operands = 2 : i64, tpu.core_type = #tpu.core_type<tc>, window_params = [{pipeline_mode = #tpu.pipeline_mode<synchronous>, transform_indices = @transform_0, window_bounds = array<i64: 4, 768>}, {pipeline_mode = #tpu.pipeline_mode<synchronous>, transform_indices = @transform_1, window_bounds = array<i64: 1, 768>}, {pipeline_mode = #tpu.pipeline_mode<synchronous>, transform_indices = @transform_2, window_bounds = array<i64: 8, 36>}, {pipeline_mode = #tpu.pipeline_mode<synchronous>, transform_indices = @transform_3, window_bounds = array<i64: 8, 72>}, {pipeline_mode = #tpu.pipeline_mode<synchronous>, transform_indices = @transform_4, window_bounds = array<i64: 8, 4>}, {pipeline_mode = #tpu.pipeline_mode<synchronous>, transform_indices = @transform_5, window_bounds = array<i64: 8, 2>}, {pipeline_mode = #tpu.pipeline_mode<synchronous>, transform_indices = @transform_6, window_bounds = array<i64: 8, 2>}, {pipeline_mode = #tpu.pipeline_mode<synchronous>, transform_indices = @transform_7, window_bounds = array<i64: 8, 768>}]} {
    %c0 = arith.constant 0 : index
    %c0_0 = arith.constant 0 : index
    %0 = vector.load %arg1[%c0, %c0_0] : memref<4x768xf32, #tpu.memory_space<vmem>>, vector<4x768xf32>
    %c0_1 = arith.constant 0 : index
    %c0_2 = arith.constant 0 : index
    %1 = vector.load %arg2[%c0_1, %c0_2] : memref<1x768xf32, #tpu.memory_space<vmem>>, vector<1x768xf32>
    %c0_3 = arith.constant 0 : index
    %c0_4 = arith.constant 0 : index
    %2 = vector.load %arg5[%c0_3, %c0_4] : memref<8x4xbf16, #tpu.memory_space<vmem>>, vector<8x4xbf16>
    %3 = arith.truncf %0 : vector<4x768xf32> to vector<4x768xbf16>
    %cst = arith.constant dense<0.000000e+00> : vector<8x768xf32>
    %4 = tpu.matmul %2, %3, %cst {dimension_numbers = #tpu.dot_dimension_numbers<[1], [0], [0], [1], [0, 0, 1, 1], [], []>} : vector<8x4xbf16>, vector<4x768xbf16>, vector<8x768xf32> -> vector<8x768xf32>
    %c19_i32 = arith.constant 19 : i32
    %5 = tpu.dynamic_rotate %0 by %c19_i32 dim 1 : vector<4x768xf32>, i32 -> vector<4x768xf32>
    %c0_5 = arith.constant 0 : index
    %c0_6 = arith.constant 0 : index
    %6 = vector.load %arg9[%c0_5, %c0_6] : memref<36x768xf32, #tpu.memory_space<vmem>>, vector<4x768xf32>
    tpu.vector_store %arg9[%c0_5, %c0_6], %5 {strides = array<i32>} : memref<36x768xf32, #tpu.memory_space<vmem>>, vector<4x768xf32>,
    %c18_i32 = arith.constant 18 : i32
    %7 = tpu.dynamic_rotate %0 by %c18_i32 dim 1 : vector<4x768xf32>, i32 -> vector<4x768xf32>
    %c4 = arith.constant 4 : index
    %c0_7 = arith.constant 0 : index
    %8 = vector.load %arg9[%c4, %c0_7] : memref<36x768xf32, #tpu.memory_space<vmem>>, vector<4x768xf32>
    tpu.vector_store %arg9[%c4, %c0_7], %7 {strides = array<i32>} : memref<36x768xf32, #tpu.memory_space<vmem>>, vector<4x768xf32>,
    %c17_i32 = arith.constant 17 : i32
    %9 = tpu.dynamic_rotate %0 by %c17_i32 dim 1 : vector<4x768xf32>, i32 -> vector<4x768xf32>
    %c8 = arith.constant 8 : index
    %c0_8 = arith.constant 0 : index
    %10 = vector.load %arg9[%c8, %c0_8] : memref<36x768xf32, #tpu.memory_space<vmem>>, vector<4x768xf32>
    tpu.vector_store %arg9[%c8, %c0_8], %9 {strides = array<i32>} : memref<36x768xf32, #tpu.memory_space<vmem>>, vector<4x768xf32>,
    %c1_i32 = arith.constant 1 : i32
    %11 = tpu.dynamic_rotate %0 by %c1_i32 dim 1 : vector<4x768xf32>, i32 -> vector<4x768xf32>
    %c12 = arith.constant 12 : index
    %c0_9 = arith.constant 0 : index
    %12 = vector.load %arg9[%c12, %c0_9] : memref<36x768xf32, #tpu.memory_space<vmem>>, vector<4x768xf32>
    tpu.vector_store %arg9[%c12, %c0_9], %11 {strides = array<i32>} : memref<36x768xf32, #tpu.memory_space<vmem>>, vector<4x768xf32>,
    %c16 = arith.constant 16 : index
    %c0_10 = arith.constant 0 : index
    %13 = vector.load %arg9[%c16, %c0_10] : memref<36x768xf32, #tpu.memory_space<vmem>>, vector<4x768xf32>
    tpu.vector_store %arg9[%c16, %c0_10], %0 {strides = array<i32>} : memref<36x768xf32, #tpu.memory_space<vmem>>, vector<4x768xf32>,
    %c767_i32 = arith.constant 767 : i32
    %14 = tpu.dynamic_rotate %0 by %c767_i32 dim 1 : vector<4x768xf32>, i32 -> vector<4x768xf32>
    %c20 = arith.constant 20 : index
    %c0_11 = arith.constant 0 : index
    %15 = vector.load %arg9[%c20, %c0_11] : memref<36x768xf32, #tpu.memory_space<vmem>>, vector<4x768xf32>
    tpu.vector_store %arg9[%c20, %c0_11], %14 {strides = array<i32>} : memref<36x768xf32, #tpu.memory_space<vmem>>, vector<4x768xf32>,
    %c751_i32 = arith.constant 751 : i32
    %16 = tpu.dynamic_rotate %0 by %c751_i32 dim 1 : vector<4x768xf32>, i32 -> vector<4x768xf32>
    %c24 = arith.constant 24 : index
    %c0_12 = arith.constant 0 : index
    %17 = vector.load %arg9[%c24, %c0_12] : memref<36x768xf32, #tpu.memory_space<vmem>>, vector<4x768xf32>
    tpu.vector_store %arg9[%c24, %c0_12], %16 {strides = array<i32>} : memref<36x768xf32, #tpu.memory_space<vmem>>, vector<4x768xf32>,
    %c750_i32 = arith.constant 750 : i32
    %18 = tpu.dynamic_rotate %0 by %c750_i32 dim 1 : vector<4x768xf32>, i32 -> vector<4x768xf32>
    %c28 = arith.constant 28 : index
    %c0_13 = arith.constant 0 : index
    %19 = vector.load %arg9[%c28, %c0_13] : memref<36x768xf32, #tpu.memory_space<vmem>>, vector<4x768xf32>
    tpu.vector_store %arg9[%c28, %c0_13], %18 {strides = array<i32>} : memref<36x768xf32, #tpu.memory_space<vmem>>, vector<4x768xf32>,
    %c749_i32 = arith.constant 749 : i32
    %20 = tpu.dynamic_rotate %0 by %c749_i32 dim 1 : vector<4x768xf32>, i32 -> vector<4x768xf32>
    %c32 = arith.constant 32 : index
    %c0_14 = arith.constant 0 : index
    %21 = vector.load %arg9[%c32, %c0_14] : memref<36x768xf32, #tpu.memory_space<vmem>>, vector<4x768xf32>
    tpu.vector_store %arg9[%c32, %c0_14], %20 {strides = array<i32>} : memref<36x768xf32, #tpu.memory_space<vmem>>, vector<4x768xf32>,
    %c0_15 = arith.constant 0 : index
    %c0_16 = arith.constant 0 : index
    %22 = vector.load %arg3[%c0_15, %c0_16] : memref<8x36xbf16, #tpu.memory_space<vmem>>, vector<8x36xbf16>
    %c0_17 = arith.constant 0 : index
    %c0_18 = arith.constant 0 : index
    %23 = vector.load %arg9[%c0_17, %c0_18] : memref<36x768xf32, #tpu.memory_space<vmem>>, vector<36x768xf32>
    %24 = arith.truncf %23 : vector<36x768xf32> to vector<36x768xbf16>
    %cst_19 = arith.constant dense<0.000000e+00> : vector<8x768xf32>
    %25 = tpu.matmul %22, %24, %cst_19 {dimension_numbers = #tpu.dot_dimension_numbers<[1], [0], [0], [1], [0, 0, 1, 1], [], []>} : vector<8x36xbf16>, vector<36x768xbf16>, vector<8x768xf32> -> vector<8x768xf32>
    %26 = vector.broadcast %1 : vector<1x768xf32> to vector<8x768xf32>
    %27 = arith.mulf %25, %26 : vector<8x768xf32>
    %cst_20 = arith.constant dense<0.000000e+00> : vector<8xf32>
    %28 = vector.multi_reduction <add>, %27, %cst_20 [1] : vector<8x768xf32> to vector<8xf32>
    %29 = vector.shape_cast %28 : vector<8xf32> to vector<8x1xf32>
    %30 = arith.mulf %27, %27 : vector<8x768xf32>
    %cst_21 = arith.constant dense<0.000000e+00> : vector<8xf32>
    %31 = vector.multi_reduction <add>, %30, %cst_21 [1] : vector<8x768xf32> to vector<8xf32>
    %32 = vector.shape_cast %31 : vector<8xf32> to vector<8x1xf32>
    %cst_22 = arith.constant 0.001953125 : f32
    %33 = vector.broadcast %cst_22 : f32 to vector<8x1xf32>
    %34 = arith.mulf %29, %33 : vector<8x1xf32>
    %cst_23 = arith.constant 0.001953125 : f32
    %35 = vector.broadcast %cst_23 : f32 to vector<8x1xf32>
    %36 = arith.mulf %32, %35 : vector<8x1xf32>
    %37 = arith.mulf %34, %34 : vector<8x1xf32>
    %38 = arith.subf %36, %37 : vector<8x1xf32>
    %cst_24 = arith.constant 0.000000e+00 : f32
    %39 = vector.broadcast %cst_24 : f32 to vector<8x1xf32>
    %40 = arith.maximumf %38, %39 : vector<8x1xf32>
    %c0_25 = arith.constant 0 : index
    %c0_26 = arith.constant 0 : index
    %41 = vector.load %arg6[%c0_25, %c0_26] : memref<8x2xf32, #tpu.memory_space<vmem>>, vector<8x1xf32>
    %cst_27 = arith.constant 9.99999974E-6 : f32
    %42 = vector.broadcast %cst_27 : f32 to vector<8x1xf32>
    %43 = arith.addf %40, %42 : vector<8x1xf32>
    %44 = math.rsqrt %43 : vector<8x1xf32>
    %45 = arith.mulf %41, %44 : vector<8x1xf32>
    %c0_28 = arith.constant 0 : index
    %c1 = arith.constant 1 : index
    %46 = vector.load %arg6[%c0_28, %c1] : memref<8x2xf32, #tpu.memory_space<vmem>>, vector<8x1xf32>
    %47 = arith.mulf %34, %45 : vector<8x1xf32>
    %48 = arith.subf %46, %47 : vector<8x1xf32>
    %49 = vector.broadcast %45 : vector<8x1xf32> to vector<8x768xf32>
    %50 = arith.mulf %25, %49 : vector<8x768xf32>
    %51 = vector.broadcast %48 : vector<8x1xf32> to vector<8x768xf32>
    %52 = arith.addf %50, %51 : vector<8x768xf32>
    %cst_29 = arith.constant 0.000000e+00 : f32
    %53 = vector.broadcast %cst_29 : f32 to vector<8x768xf32>
    %54 = arith.cmpf oge, %52, %53 : vector<8x768xf32>
    %cst_30 = arith.constant 2.000000e-01 : f32
    %55 = vector.broadcast %cst_30 : f32 to vector<8x768xf32>
    %56 = arith.mulf %55, %52 : vector<8x768xf32>
    %57 = arith.select %54, %52, %56 : vector<8x768xi1>, vector<8x768xf32>
    %58 = vector.broadcast %1 : vector<1x768xf32> to vector<8x768xf32>
    %59 = arith.mulf %57, %58 : vector<8x768xf32>
    %c19_i32_31 = arith.constant 19 : i32
    %60 = tpu.dynamic_rotate %59 by %c19_i32_31 dim 1 : vector<8x768xf32>, i32 -> vector<8x768xf32>
    %c0_32 = arith.constant 0 : index
    %c0_33 = arith.constant 0 : index
    %61 = vector.load %arg10[%c0_32, %c0_33] : memref<72x768xf32, #tpu.memory_space<vmem>>, vector<8x768xf32>
    tpu.vector_store %arg10[%c0_32, %c0_33], %60 {strides = array<i32>} : memref<72x768xf32, #tpu.memory_space<vmem>>, vector<8x768xf32>,
    %c18_i32_34 = arith.constant 18 : i32
    %62 = tpu.dynamic_rotate %59 by %c18_i32_34 dim 1 : vector<8x768xf32>, i32 -> vector<8x768xf32>
    %c8_35 = arith.constant 8 : index
    %c0_36 = arith.constant 0 : index
    %63 = vector.load %arg10[%c8_35, %c0_36] : memref<72x768xf32, #tpu.memory_space<vmem>>, vector<8x768xf32>
    tpu.vector_store %arg10[%c8_35, %c0_36], %62 {strides = array<i32>} : memref<72x768xf32, #tpu.memory_space<vmem>>, vector<8x768xf32>,
    %c17_i32_37 = arith.constant 17 : i32
    %64 = tpu.dynamic_rotate %59 by %c17_i32_37 dim 1 : vector<8x768xf32>, i32 -> vector<8x768xf32>
    %c16_38 = arith.constant 16 : index
    %c0_39 = arith.constant 0 : index
    %65 = vector.load %arg10[%c16_38, %c0_39] : memref<72x768xf32, #tpu.memory_space<vmem>>, vector<8x768xf32>
    tpu.vector_store %arg10[%c16_38, %c0_39], %64 {strides = array<i32>} : memref<72x768xf32, #tpu.memory_space<vmem>>, vector<8x768xf32>,
    %c1_i32_40 = arith.constant 1 : i32
    %66 = tpu.dynamic_rotate %59 by %c1_i32_40 dim 1 : vector<8x768xf32>, i32 -> vector<8x768xf32>
    %c24_41 = arith.constant 24 : index
    %c0_42 = arith.constant 0 : index
    %67 = vector.load %arg10[%c24_41, %c0_42] : memref<72x768xf32, #tpu.memory_space<vmem>>, vector<8x768xf32>
    tpu.vector_store %arg10[%c24_41, %c0_42], %66 {strides = array<i32>} : memref<72x768xf32, #tpu.memory_space<vmem>>, vector<8x768xf32>,
    %c32_43 = arith.constant 32 : index
    %c0_44 = arith.constant 0 : index
    %68 = vector.load %arg10[%c32_43, %c0_44] : memref<72x768xf32, #tpu.memory_space<vmem>>, vector<8x768xf32>
    tpu.vector_store %arg10[%c32_43, %c0_44], %59 {strides = array<i32>} : memref<72x768xf32, #tpu.memory_space<vmem>>, vector<8x768xf32>,
    %c767_i32_45 = arith.constant 767 : i32
    %69 = tpu.dynamic_rotate %59 by %c767_i32_45 dim 1 : vector<8x768xf32>, i32 -> vector<8x768xf32>
    %c40 = arith.constant 40 : index
    %c0_46 = arith.constant 0 : index
    %70 = vector.load %arg10[%c40, %c0_46] : memref<72x768xf32, #tpu.memory_space<vmem>>, vector<8x768xf32>
    tpu.vector_store %arg10[%c40, %c0_46], %69 {strides = array<i32>} : memref<72x768xf32, #tpu.memory_space<vmem>>, vector<8x768xf32>,
    %c751_i32_47 = arith.constant 751 : i32
    %71 = tpu.dynamic_rotate %59 by %c751_i32_47 dim 1 : vector<8x768xf32>, i32 -> vector<8x768xf32>
    %c48 = arith.constant 48 : index
    %c0_48 = arith.constant 0 : index
    %72 = vector.load %arg10[%c48, %c0_48] : memref<72x768xf32, #tpu.memory_space<vmem>>, vector<8x768xf32>
    tpu.vector_store %arg10[%c48, %c0_48], %71 {strides = array<i32>} : memref<72x768xf32, #tpu.memory_space<vmem>>, vector<8x768xf32>,
    %c750_i32_49 = arith.constant 750 : i32
    %73 = tpu.dynamic_rotate %59 by %c750_i32_49 dim 1 : vector<8x768xf32>, i32 -> vector<8x768xf32>
    %c56 = arith.constant 56 : index
    %c0_50 = arith.constant 0 : index
    %74 = vector.load %arg10[%c56, %c0_50] : memref<72x768xf32, #tpu.memory_space<vmem>>, vector<8x768xf32>
    tpu.vector_store %arg10[%c56, %c0_50], %73 {strides = array<i32>} : memref<72x768xf32, #tpu.memory_space<vmem>>, vector<8x768xf32>,
    %c749_i32_51 = arith.constant 749 : i32
    %75 = tpu.dynamic_rotate %59 by %c749_i32_51 dim 1 : vector<8x768xf32>, i32 -> vector<8x768xf32>
    %c64 = arith.constant 64 : index
    %c0_52 = arith.constant 0 : index
    %76 = vector.load %arg10[%c64, %c0_52] : memref<72x768xf32, #tpu.memory_space<vmem>>, vector<8x768xf32>
    tpu.vector_store %arg10[%c64, %c0_52], %75 {strides = array<i32>} : memref<72x768xf32, #tpu.memory_space<vmem>>, vector<8x768xf32>,
    %c0_53 = arith.constant 0 : index
    %c0_54 = arith.constant 0 : index
    %77 = vector.load %arg4[%c0_53, %c0_54] : memref<8x72xbf16, #tpu.memory_space<vmem>>, vector<8x72xbf16>
    %c0_55 = arith.constant 0 : index
    %c0_56 = arith.constant 0 : index
    %78 = vector.load %arg10[%c0_55, %c0_56] : memref<72x768xf32, #tpu.memory_space<vmem>>, vector<72x768xf32>
    %79 = arith.truncf %78 : vector<72x768xf32> to vector<72x768xbf16>
    %cst_57 = arith.constant dense<0.000000e+00> : vector<8x768xf32>
    %80 = tpu.matmul %77, %79, %cst_57 {dimension_numbers = #tpu.dot_dimension_numbers<[1], [0], [0], [1], [0, 0, 1, 1], [], []>} : vector<8x72xbf16>, vector<72x768xbf16>, vector<8x768xf32> -> vector<8x768xf32>
    %81 = vector.broadcast %1 : vector<1x768xf32> to vector<8x768xf32>
    %82 = arith.mulf %80, %81 : vector<8x768xf32>
    %cst_58 = arith.constant dense<0.000000e+00> : vector<8xf32>
    %83 = vector.multi_reduction <add>, %82, %cst_58 [1] : vector<8x768xf32> to vector<8xf32>
    %84 = vector.shape_cast %83 : vector<8xf32> to vector<8x1xf32>
    %85 = arith.mulf %82, %82 : vector<8x768xf32>
    %cst_59 = arith.constant dense<0.000000e+00> : vector<8xf32>
    %86 = vector.multi_reduction <add>, %85, %cst_59 [1] : vector<8x768xf32> to vector<8xf32>
    %87 = vector.shape_cast %86 : vector<8xf32> to vector<8x1xf32>
    %cst_60 = arith.constant 0.001953125 : f32
    %88 = vector.broadcast %cst_60 : f32 to vector<8x1xf32>
    %89 = arith.mulf %84, %88 : vector<8x1xf32>
    %cst_61 = arith.constant 0.001953125 : f32
    %90 = vector.broadcast %cst_61 : f32 to vector<8x1xf32>
    %91 = arith.mulf %87, %90 : vector<8x1xf32>
    %92 = arith.mulf %89, %89 : vector<8x1xf32>
    %93 = arith.subf %91, %92 : vector<8x1xf32>
    %cst_62 = arith.constant 0.000000e+00 : f32
    %94 = vector.broadcast %cst_62 : f32 to vector<8x1xf32>
    %95 = arith.maximumf %93, %94 : vector<8x1xf32>
    %c0_63 = arith.constant 0 : index
    %c0_64 = arith.constant 0 : index
    %96 = vector.load %arg7[%c0_63, %c0_64] : memref<8x2xf32, #tpu.memory_space<vmem>>, vector<8x1xf32>
    %cst_65 = arith.constant 9.99999974E-6 : f32
    %97 = vector.broadcast %cst_65 : f32 to vector<8x1xf32>
    %98 = arith.addf %95, %97 : vector<8x1xf32>
    %99 = math.rsqrt %98 : vector<8x1xf32>
    %100 = arith.mulf %96, %99 : vector<8x1xf32>
    %c0_66 = arith.constant 0 : index
    %c1_67 = arith.constant 1 : index
    %101 = vector.load %arg7[%c0_66, %c1_67] : memref<8x2xf32, #tpu.memory_space<vmem>>, vector<8x1xf32>
    %102 = arith.mulf %89, %100 : vector<8x1xf32>
    %103 = arith.subf %101, %102 : vector<8x1xf32>
    %104 = vector.broadcast %100 : vector<8x1xf32> to vector<8x768xf32>
    %105 = arith.mulf %80, %104 : vector<8x768xf32>
    %106 = vector.broadcast %103 : vector<8x1xf32> to vector<8x768xf32>
    %107 = arith.addf %105, %106 : vector<8x768xf32>
    %108 = arith.addf %107, %4 : vector<8x768xf32>
    %cst_68 = arith.constant 0.000000e+00 : f32
    %109 = vector.broadcast %cst_68 : f32 to vector<8x768xf32>
    %110 = arith.cmpf oge, %108, %109 : vector<8x768xf32>
    %cst_69 = arith.constant 2.000000e-01 : f32
    %111 = vector.broadcast %cst_69 : f32 to vector<8x768xf32>
    %112 = arith.mulf %111, %108 : vector<8x768xf32>
    %113 = arith.select %110, %108, %112 : vector<8x768xi1>, vector<8x768xf32>
    %114 = math.tanh %113 : vector<8x768xf32>
    %c0_70 = arith.constant 0 : index
    %c0_71 = arith.constant 0 : index
    %115 = vector.load %arg8[%c0_70, %c0_71] : memref<8x768xf32, #tpu.memory_space<vmem>>, vector<8x768xf32>
    tpu.vector_store %arg8[%c0_70, %c0_71], %114 {strides = array<i32>} : memref<8x768xf32, #tpu.memory_space<vmem>>, vector<8x768xf32>,
    return
  }
  func.func @transform_0(%arg0: i32) -> (i32, i32) {
    %c0_i32 = arith.constant 0 : i32
    %c0_i32_0 = arith.constant 0 : i32
    %c0_i32_1 = arith.constant 0 : i32
    return %c0_i32, %c0_i32_0 : i32, i32
  }
  func.func @transform_1(%arg0: i32) -> (i32, i32) {
    %c0_i32 = arith.constant 0 : i32
    %c0_i32_0 = arith.constant 0 : i32
    %c0_i32_1 = arith.constant 0 : i32
    return %c0_i32, %c0_i32_0 : i32, i32
  }
  func.func @transform_2(%arg0: i32) -> (i32, i32) {
    %c0_i32 = arith.constant 0 : i32
    %c0_i32_0 = arith.constant 0 : i32
    %c0_i32_1 = arith.constant 0 : i32
    return %c0_i32, %c0_i32_0 : i32, i32
  }
  func.func @transform_3(%arg0: i32) -> (i32, i32) {
    %c0_i32 = arith.constant 0 : i32
    %c0_i32_0 = arith.constant 0 : i32
    %c0_i32_1 = arith.constant 0 : i32
    return %c0_i32, %c0_i32_0 : i32, i32
  }
  func.func @transform_4(%arg0: i32) -> (i32, i32) {
    %c0_i32 = arith.constant 0 : i32
    %c0_i32_0 = arith.constant 0 : i32
    %c0_i32_1 = arith.constant 0 : i32
    return %c0_i32, %c0_i32_0 : i32, i32
  }
  func.func @transform_5(%arg0: i32) -> (i32, i32) {
    %c0_i32 = arith.constant 0 : i32
    %c0_i32_0 = arith.constant 0 : i32
    %c0_i32_1 = arith.constant 0 : i32
    return %c0_i32, %c0_i32_0 : i32, i32
  }
  func.func @transform_6(%arg0: i32) -> (i32, i32) {
    %c0_i32 = arith.constant 0 : i32
    %c0_i32_0 = arith.constant 0 : i32
    %c0_i32_1 = arith.constant 0 : i32
    return %c0_i32, %c0_i32_0 : i32, i32
  }
  func.func @transform_7(%arg0: i32) -> (i32, i32) {
    %c0_i32 = arith.constant 0 : i32
    %c0_i32_0 = arith.constant 0 : i32
    %c0_i32_1 = arith.constant 0 : i32
    return %c0_i32, %c0_i32_0 : i32, i32
  }
}

</mosaic_0001>

<llo_original>
// kernel: residual_block_forward.1
$region0: #{residual_block_forward.1}
  #allocation0 [shape = 'u32[]', space=smem, size = 0x4, offset = 0x4, fixed_abs, tag = 'smem constant byte address 0x4 - core index']
  #allocation1 [shape = 'u32[144,128]{1,0:T(1,128)}', space=vmem, size = 0x12000, scoped, tag = 'internal scratch']
  #allocation2 [shape = 'f32[36,768]{1,0:T(8,128)}', space=vmem, size = 0x1e000, scoped, tag = 'scratch operand']
  #allocation3 [shape = 'f32[72,768]{1,0:T(8,128)}', space=vmem, size = 0x36000, scoped, tag = 'scratch operand']
  %s0 = inlined_call_operand.vmem [shape: f32[4,768], index: 0, kind: input, shape index: {}]
  %s1 = inlined_call_operand.vmem [shape: f32[1,768], index: 1, kind: input, shape index: {}]
  %s2 = inlined_call_operand.vmem [shape: bf16[8,36], index: 2, kind: input, shape index: {}]
  %s3 = inlined_call_operand.vmem [shape: bf16[8,72], index: 3, kind: input, shape index: {}]
  %s4 = inlined_call_operand.vmem [shape: bf16[8,4], index: 4, kind: input, shape index: {}]
  %s5 = inlined_call_operand.vmem [shape: f32[8,2], index: 5, kind: input, shape index: {}]
  %s6 = inlined_call_operand.vmem [shape: f32[8,2], index: 6, kind: input, shape index: {}]
  %s7 = inlined_call_operand.vmem [shape: f32[8,768], index: 7, kind: output, shape index: {}]
  %s8 = sld [smem:[#allocation0]]
  $region38: #{residual_block_forward.1} parent=0
    _
  %s10 = ssub.s32 1, %s8
  %s11 = scalar_select 0, %s10, %s8
  // Predicated region
  $region2: #{residual_block_forward.1} parent=0 // pred_check
    _
  $region3: #{residual_block_forward.1} parent=0 // pred_check_branch
    %13 = sbr.rel (0) target = $region5
  $region4: #{residual_block_forward.1} parent=0 // pred_region
    _
  $region5: #{residual_block_forward.1} parent=0 // pred_fallthru
    _
  // Predicated region
  $region6: #{residual_block_forward.1} parent=0 // pred_check
    _
  $region7: #{residual_block_forward.1} parent=0 // pred_check_branch
    %15 = sbr.rel (0) target = $region9
  $region8: #{residual_block_forward.1} parent=0 // pred_region
    _
  $region9: #{residual_block_forward.1} parent=0 // pred_fallthru
    _
  // Predicated region
  $region10: #{residual_block_forward.1} parent=0 // pred_check
    _
  $region11: #{residual_block_forward.1} parent=0 // pred_check_branch
    %17 = sbr.rel (0) target = $region13
  $region12: #{residual_block_forward.1} parent=0 // pred_region
    _
  $region13: #{residual_block_forward.1} parent=0 // pred_fallthru
    _
  // Predicated region
  $region14: #{residual_block_forward.1} parent=0 // pred_check
    _
  $region15: #{residual_block_forward.1} parent=0 // pred_check_branch
    %19 = sbr.rel (0) target = $region17
  $region16: #{residual_block_forward.1} parent=0 // pred_region
    _
  $region17: #{residual_block_forward.1} parent=0 // pred_fallthru
    _
  // Predicated region
  $region18: #{residual_block_forward.1} parent=0 // pred_check
    _
  $region19: #{residual_block_forward.1} parent=0 // pred_check_branch
    %21 = sbr.rel (0) target = $region21
  $region20: #{residual_block_forward.1} parent=0 // pred_region
    _
  $region21: #{residual_block_forward.1} parent=0 // pred_fallthru
    _
  // Predicated region
  $region22: #{residual_block_forward.1} parent=0 // pred_check
    _
  $region23: #{residual_block_forward.1} parent=0 // pred_check_branch
    %23 = sbr.rel (0) target = $region25
  $region24: #{residual_block_forward.1} parent=0 // pred_region
    _
  $region25: #{residual_block_forward.1} parent=0 // pred_fallthru
    _
  // Predicated region
  $region26: #{residual_block_forward.1} parent=0 // pred_check
    _
  $region27: #{residual_block_forward.1} parent=0 // pred_check_branch
    %25 = sbr.rel (0) target = $region29
  $region28: #{residual_block_forward.1} parent=0 // pred_region
    _
  $region29: #{residual_block_forward.1} parent=0 // pred_fallthru
    _
  %v27 = vld [vmem:[%s0] sm:$0xff]
  %v28 = vld [vmem:[%s0 + $0x8] sm:$0xff]
  %v29 = vld [vmem:[%s0 + $0x10] sm:$0xff]
  %v30 = vld [vmem:[%s1] sm:$0x3f]
  %v31 = vld [vmem:[%s4] sm:$0xf]
  %v35 = vcombine.high %v27, %v27
  %v36 = vcombine.high %v28, %v28
  %v37 = vcombine.high %v29, %v29
  %v41 = vpack.c.bf16 %v27, %v27
  %v42 = vpack.c.bf16 %v35, %v35
  %v43 = vpack.c.bf16 %v28, %v28
  %v44 = vpack.c.bf16 %v36, %v36
  %v45 = vpack.c.bf16 %v29, %v29
  %v46 = vpack.c.bf16 %v37, %v37
  %vm47 = vcmask 31744
  %v49 = vsel %vm47, %v31, 0
  %vm51 = vcmask 1041408
  %v53 = vsel %vm51, %v41, 0
  %v56 = vsel %vm51, %v42, 0
  %v59 = vsel %vm51, %v43, 0
  %v62 = vsel %vm51, %v44, 0
  %v65 = vsel %vm51, %v45, 0
  %v68 = vsel %vm51, %v46, 0
  %70 = vmatprep.subr.bf16.mxu0 %v56
  %71 = vmatpush1.bf16.msra.mxu0 %v53
  %72 = vmatprep.subr.bf16.mxu0 0
  %73 = vmatpush1.bf16.msra.mxu0 0
  %74 = vmatprep.subr.bf16.mxu0 0
  %75 = vmatpush1.bf16.msra.mxu0 0
  %76 = vmatprep.subr.bf16.mxu0 0
  %77 = vmatpush1.bf16.msra.mxu0 0
  %78 = vmatprep.subr.bf16.mxu0 0
  %79 = vmatpush1.bf16.msra.mxu0 0
  %80 = vmatprep.subr.bf16.mxu0 0
  %81 = vmatpush1.bf16.msra.mxu0 0
  %82 = vmatprep.subr.bf16.mxu0 0
  %83 = vmatpush1.bf16.msra.mxu0 0
  %84 = vmatprep.subr.bf16.mxu0 0
  %85 = vmatpush1.bf16.msra.mxu0 0
  %86 = vmatprep.subr.bf16.mxu0 0
  %87 = vmatpush1.bf16.msra.mxu0 0
  %88 = vmatprep.subr.bf16.mxu0 0
  %89 = vmatpush1.bf16.msra.mxu0 0
  %90 = vmatprep.subr.bf16.mxu0 0
  %91 = vmatpush1.bf16.msra.mxu0 0
  %92 = vmatprep.subr.bf16.mxu0 0
  %93 = vmatpush1.bf16.msra.mxu0 0
  %94 = vmatprep.subr.bf16.mxu0 0
  %95 = vmatpush1.bf16.msra.mxu0 0
  %96 = vmatprep.subr.bf16.mxu0 0
  %97 = vmatpush1.bf16.msra.mxu0 0
  %98 = vmatprep.subr.bf16.mxu0 0
  %99 = vmatpush1.bf16.msra.mxu0 0
  %100 = vmatprep.subr.bf16.mxu0 0
  %101 = vmatpush1.bf16.msra.mxu0 0
  %102 = vmatprep.mubr.bf16.mxu0 0
  %103 = vmatmul.mubr.bf16.gmra.mrb[0].mxu0 %v49
  %v104 = vpop.f32.mrb[0].mxu0
  %v105 = vadd.f32 0.0, %v104
  %v106 = vpop.f32.mrb[0].mxu0
  %v107 = vadd.f32 0.0, %v106
  %v108 = vpop.f32.mrb[0].mxu0
  %v109 = vpop.f32.mrb[0].mxu0
  %110 = vdwg.mxu0
  %111 = vmatprep.subr.bf16.mxu0 %v62
  %112 = vmatpush1.bf16.msra.mxu0 %v59
  %113 = vmatprep.subr.bf16.mxu0 0
  %114 = vmatpush1.bf16.msra.mxu0 0
  %115 = vmatprep.subr.bf16.mxu0 0
  %116 = vmatpush1.bf16.msra.mxu0 0
  %117 = vmatprep.subr.bf16.mxu0 0
  %118 = vmatpush1.bf16.msra.mxu0 0
  %119 = vmatprep.subr.bf16.mxu0 0
  %120 = vmatpush1.bf16.msra.mxu0 0
  %121 = vmatprep.subr.bf16.mxu0 0
  %122 = vmatpush1.bf16.msra.mxu0 0
  %123 = vmatprep.subr.bf16.mxu0 0
  %124 = vmatpush1.bf16.msra.mxu0 0
  %125 = vmatprep.subr.bf16.mxu0 0
  %126 = vmatpush1.bf16.msra.mxu0 0
  %127 = vmatprep.subr.bf16.mxu0 0
  %128 = vmatpush1.bf16.msra.mxu0 0
  %129 = vmatprep.subr.bf16.mxu0 0
  %130 = vmatpush1.bf16.msra.mxu0 0
  %131 = vmatprep.subr.bf16.mxu0 0
  %132 = vmatpush1.bf16.msra.mxu0 0
  %133 = vmatprep.subr.bf16.mxu0 0
  %134 = vmatpush1.bf16.msra.mxu0 0
  %135 = vmatprep.subr.bf16.mxu0 0
  %136 = vmatpush1.bf16.msra.mxu0 0
  %137 = vmatprep.subr.bf16.mxu0 0
  %138 = vmatpush1.bf16.msra.mxu0 0
  %139 = vmatprep.subr.bf16.mxu0 0
  %140 = vmatpush1.bf16.msra.mxu0 0
  %141 = vmatprep.subr.bf16.mxu0 0
  %142 = vmatpush1.bf16.msra.mxu0 0
  %143 = vmatprep.mubr.bf16.mxu0 0
  %144 = vmatmul.mubr.bf16.gmra.mrb[0].mxu0 %v49
  %v145 = vpop.f32.mrb[0].mxu0
  %v146 = vadd.f32 0.0, %v145
  %v147 = vpop.f32.mrb[0].mxu0
  %v148 = vadd.f32 0.0, %v147
  %v149 = vpop.f32.mrb[0].mxu0
  %v150 = vpop.f32.mrb[0].mxu0
  %151 = vdwg.mxu0
  %152 = vmatprep.subr.bf16.mxu0 %v68
  %153 = vmatpush1.bf16.msra.mxu0 %v65
  %154 = vmatprep.subr.bf16.mxu0 0
  %155 = vmatpush1.bf16.msra.mxu0 0
  %156 = vmatprep.subr.bf16.mxu0 0
  %157 = vmatpush1.bf16.msra.mxu0 0
  %158 = vmatprep.subr.bf16.mxu0 0
  %159 = vmatpush1.bf16.msra.mxu0 0
  %160 = vmatprep.subr.bf16.mxu0 0
  %161 = vmatpush1.bf16.msra.mxu0 0
  %162 = vmatprep.subr.bf16.mxu0 0
  %163 = vmatpush1.bf16.msra.mxu0 0
  %164 = vmatprep.subr.bf16.mxu0 0
  %165 = vmatpush1.bf16.msra.mxu0 0
  %166 = vmatprep.subr.bf16.mxu0 0
  %167 = vmatpush1.bf16.msra.mxu0 0
  %168 = vmatprep.subr.bf16.mxu0 0
  %169 = vmatpush1.bf16.msra.mxu0 0
  %170 = vmatprep.subr.bf16.mxu0 0
  %171 = vmatpush1.bf16.msra.mxu0 0
  %172 = vmatprep.subr.bf16.mxu0 0
  %173 = vmatpush1.bf16.msra.mxu0 0
  %174 = vmatprep.subr.bf16.mxu0 0
  %175 = vmatpush1.bf16.msra.mxu0 0
  %176 = vmatprep.subr.bf16.mxu0 0
  %177 = vmatpush1.bf16.msra.mxu0 0
  %178 = vmatprep.subr.bf16.mxu0 0
  %179 = vmatpush1.bf16.msra.mxu0 0
  %180 = vmatprep.subr.bf16.mxu0 0
  %181 = vmatpush1.bf16.msra.mxu0 0
  %182 = vmatprep.subr.bf16.mxu0 0
  %183 = vmatpush1.bf16.msra.mxu0 0
  %184 = vmatprep.mubr.bf16.mxu0 0
  %185 = vmatmul.mubr.bf16.gmra.mrb[0].mxu0 %v49
  %v186 = vpop.f32.mrb[0].mxu0
  %v187 = vadd.f32 0.0, %v186
  %v188 = vpop.f32.mrb[0].mxu0
  %v189 = vadd.f32 0.0, %v188
  %v190 = vpop.f32.mrb[0].mxu0
  %v191 = vpop.f32.mrb[0].mxu0
  %192 = vdwg.mxu0
  %193 = vrot.lane.b32.xlu0 %v27, 19
  %v194 = vpop.permute.xlu0 %193
  %195 = vrot.lane.b32.xlu0 %v35, 19
  %v196 = vpop.permute.xlu0 %195
  %197 = vrot.lane.b32.xlu0 %v28, 19
  %v198 = vpop.permute.xlu0 %197
  %199 = vrot.lane.b32.xlu0 %v36, 19
  %v200 = vpop.permute.xlu0 %199
  %201 = vrot.lane.b32.xlu0 %v29, 19
  %v202 = vpop.permute.xlu0 %201
  %203 = vrot.lane.b32.xlu0 %v37, 19
  %v204 = vpop.permute.xlu0 %203
  %v205 = vlaneseq
  %v206 = vand.u32 %v205, 127
  %vm207 = vcmp.lt.s32.totalorder %v206, 19
  %v208 = vsel %vm207, %v202, %v204
  %v209 = vsel %vm207, %v200, %v202
  %v210 = vsel %vm207, %v198, %v200
  %v211 = vsel %vm207, %v196, %v198
  %v212 = vsel %vm207, %v194, %v196
  %v213 = vsel %vm207, %v204, %v194
  %214 = vst [vmem:[#allocation2] sm:$0xf] %v213
  %215 = vst [vmem:[#allocation2 + $0x8] sm:$0xf] %v212
  %216 = vst [vmem:[#allocation2 + $0x10] sm:$0xf] %v211
  %217 = vst [vmem:[#allocation2 + $0x18] sm:$0xf] %v210
  %218 = vst [vmem:[#allocation2 + $0x20] sm:$0xf] %v209
  %219 = vst [vmem:[#allocation2 + $0x28] sm:$0xf] %v208
  %220 = vrot.lane.b32.xlu0 %v27, 18
  %v221 = vpop.permute.xlu0 %220
  %222 = vrot.lane.b32.xlu0 %v35, 18
  %v223 = vpop.permute.xlu0 %222
  %224 = vrot.lane.b32.xlu0 %v28, 18
  %v225 = vpop.permute.xlu0 %224
  %226 = vrot.lane.b32.xlu0 %v36, 18
  %v227 = vpop.permute.xlu0 %226
  %228 = vrot.lane.b32.xlu0 %v29, 18
  %v229 = vpop.permute.xlu0 %228
  %230 = vrot.lane.b32.xlu0 %v37, 18
  %v231 = vpop.permute.xlu0 %230
  %vm232 = vcmp.lt.s32.totalorder %v206, 18
  %v233 = vsel %vm232, %v229, %v231
  %v234 = vsel %vm232, %v227, %v229
  %v235 = vsel %vm232, %v225, %v227
  %v236 = vsel %vm232, %v223, %v225
  %v237 = vsel %vm232, %v221, %v223
  %v238 = vsel %vm232, %v231, %v221
  %v245 = vrot.slane %v238, 4
  %v246 = vrot.slane %v237, 4
  %v247 = vrot.slane %v236, 4
  %v248 = vrot.slane %v235, 4
  %v249 = vrot.slane %v234, 4
  %v250 = vrot.slane %v233, 4
  %257 = vst [vmem:[#allocation2] sm:$0xf0] %v245
  %258 = vst [vmem:[#allocation2 + $0x8] sm:$0xf0] %v246
  %259 = vst [vmem:[#allocation2 + $0x10] sm:$0xf0] %v247
  %260 = vst [vmem:[#allocation2 + $0x18] sm:$0xf0] %v248
  %261 = vst [vmem:[#allocation2 + $0x20] sm:$0xf0] %v249
  %262 = vst [vmem:[#allocation2 + $0x28] sm:$0xf0] %v250
  %263 = vrot.lane.b32.xlu0 %v27, 17
  %v264 = vpop.permute.xlu0 %263
  %265 = vrot.lane.b32.xlu0 %v35, 17
  %v266 = vpop.permute.xlu0 %265
  %267 = vrot.lane.b32.xlu0 %v28, 17
  %v268 = vpop.permute.xlu0 %267
  %269 = vrot.lane.b32.xlu0 %v36, 17
  %v270 = vpop.permute.xlu0 %269
  %271 = vrot.lane.b32.xlu0 %v29, 17
  %v272 = vpop.permute.xlu0 %271
  %273 = vrot.lane.b32.xlu0 %v37, 17
  %v274 = vpop.permute.xlu0 %273
  %vm275 = vcmp.lt.s32.totalorder %v206, 17
  %v276 = vsel %vm275, %v272, %v274
  %v277 = vsel %vm275, %v270, %v272
  %v278 = vsel %vm275, %v268, %v270
  %v279 = vsel %vm275, %v266, %v268
  %v280 = vsel %vm275, %v264, %v266
  %v281 = vsel %vm275, %v274, %v264
  %282 = vst [vmem:[#allocation2 + $0x30] sm:$0xf] %v281
  %283 = vst [vmem:[#allocation2 + $0x38] sm:$0xf] %v280
  %284 = vst [vmem:[#allocation2 + $0x40] sm:$0xf] %v279
  %285 = vst [vmem:[#allocation2 + $0x48] sm:$0xf] %v278
  %286 = vst [vmem:[#allocation2 + $0x50] sm:$0xf] %v277
  %287 = vst [vmem:[#allocation2 + $0x58] sm:$0xf] %v276
  %288 = vrot.lane.b32.xlu0 %v27, 1
  %v289 = vpop.permute.xlu0 %288
  %290 = vrot.lane.b32.xlu0 %v35, 1
  %v291 = vpop.permute.xlu0 %290
  %292 = vrot.lane.b32.xlu0 %v28, 1
  %v293 = vpop.permute.xlu0 %292
  %294 = vrot.lane.b32.xlu0 %v36, 1
  %v295 = vpop.permute.xlu0 %294
  %296 = vrot.lane.b32.xlu0 %v29, 1
  %v297 = vpop.permute.xlu0 %296
  %298 = vrot.lane.b32.xlu0 %v37, 1
  %v299 = vpop.permute.xlu0 %298
  %vm300 = vcmp.lt.s32.totalorder %v206, 1
  %v301 = vsel %vm300, %v297, %v299
  %v302 = vsel %vm300, %v295, %v297
  %v303 = vsel %vm300, %v293, %v295
  %v304 = vsel %vm300, %v291, %v293
  %v305 = vsel %vm300, %v289, %v291
  %v306 = vsel %vm300, %v299, %v289
  %v313 = vrot.slane %v306, 4
  %v314 = vrot.slane %v305, 4
  %v315 = vrot.slane %v304, 4
  %v316 = vrot.slane %v303, 4
  %v317 = vrot.slane %v302, 4
  %v318 = vrot.slane %v301, 4
  %325 = vst [vmem:[#allocation2 + $0x30] sm:$0xf0] %v313
  %326 = vst [vmem:[#allocation2 + $0x38] sm:$0xf0] %v314
  %327 = vst [vmem:[#allocation2 + $0x40] sm:$0xf0] %v315
  %328 = vst [vmem:[#allocation2 + $0x48] sm:$0xf0] %v316
  %329 = vst [vmem:[#allocation2 + $0x50] sm:$0xf0] %v317
  %330 = vst [vmem:[#allocation2 + $0x58] sm:$0xf0] %v318
  %331 = vst [vmem:[#allocation2 + $0x60] sm:$0xf] %v27
  %332 = vst [vmem:[#allocation2 + $0x68] sm:$0xf] %v35
  %333 = vst [vmem:[#allocation2 + $0x70] sm:$0xf] %v28
  %334 = vst [vmem:[#allocation2 + $0x78] sm:$0xf] %v36
  %335 = vst [vmem:[#allocation2 + $0x80] sm:$0xf] %v29
  %336 = vst [vmem:[#allocation2 + $0x88] sm:$0xf] %v37
  %337 = vrot.lane.b32.xlu0 %v27, 127
  %v338 = vpop.permute.xlu0 %337
  %339 = vrot.lane.b32.xlu0 %v35, 127
  %v340 = vpop.permute.xlu0 %339
  %341 = vrot.lane.b32.xlu0 %v28, 127
  %v342 = vpop.permute.xlu0 %341
  %343 = vrot.lane.b32.xlu0 %v36, 127
  %v344 = vpop.permute.xlu0 %343
  %345 = vrot.lane.b32.xlu0 %v29, 127
  %v346 = vpop.permute.xlu0 %345
  %347 = vrot.lane.b32.xlu0 %v37, 127
  %v348 = vpop.permute.xlu0 %347
  %vm349 = vcmp.lt.s32.totalorder %v206, 127
  %v350 = vsel %vm349, %v346, %v348
  %v351 = vsel %vm349, %v344, %v346
  %v352 = vsel %vm349, %v342, %v344
  %v353 = vsel %vm349, %v340, %v342
  %v354 = vsel %vm349, %v338, %v340
  %v355 = vsel %vm349, %v348, %v338
  %v362 = vrot.slane %v354, 4
  %v363 = vrot.slane %v353, 4
  %v364 = vrot.slane %v352, 4
  %v365 = vrot.slane %v351, 4
  %v366 = vrot.slane %v350, 4
  %v367 = vrot.slane %v355, 4
  %374 = vst [vmem:[#allocation2 + $0x60] sm:$0xf0] %v362
  %375 = vst [vmem:[#allocation2 + $0x68] sm:$0xf0] %v363
  %376 = vst [vmem:[#allocation2 + $0x70] sm:$0xf0] %v364
  %377 = vst [vmem:[#allocation2 + $0x78] sm:$0xf0] %v365
  %378 = vst [vmem:[#allocation2 + $0x80] sm:$0xf0] %v366
  %379 = vst [vmem:[#allocation2 + $0x88] sm:$0xf0] %v367
  %380 = vrot.lane.b32.xlu0 %v27, 111
  %v381 = vpop.permute.xlu0 %380
  %382 = vrot.lane.b32.xlu0 %v35, 111
  %v383 = vpop.permute.xlu0 %382
  %384 = vrot.lane.b32.xlu0 %v28, 111
  %v385 = vpop.permute.xlu0 %384
  %386 = vrot.lane.b32.xlu0 %v36, 111
  %v387 = vpop.permute.xlu0 %386
  %388 = vrot.lane.b32.xlu0 %v29, 111
  %v389 = vpop.permute.xlu0 %388
  %390 = vrot.lane.b32.xlu0 %v37, 111
  %v391 = vpop.permute.xlu0 %390
  %vm392 = vcmp.lt.s32.totalorder %v206, 111
  %v393 = vsel %vm392, %v389, %v391
  %v394 = vsel %vm392, %v387, %v389
  %v395 = vsel %vm392, %v385, %v387
  %v396 = vsel %vm392, %v383, %v385
  %v397 = vsel %vm392, %v381, %v383
  %v398 = vsel %vm392, %v391, %v381
  %399 = vst [vmem:[#allocation2 + $0x90] sm:$0xf] %v397
  %400 = vst [vmem:[#allocation2 + $0x98] sm:$0xf] %v396
  %401 = vst [vmem:[#allocation2 + $0xa0] sm:$0xf] %v395
  %402 = vst [vmem:[#allocation2 + $0xa8] sm:$0xf] %v394
  %403 = vst [vmem:[#allocation2 + $0xb0] sm:$0xf] %v393
  %404 = vst [vmem:[#allocation2 + $0xb8] sm:$0xf] %v398
  %405 = vrot.lane.b32.xlu0 %v27, 110
  %v406 = vpop.permute.xlu0 %405
  %407 = vrot.lane.b32.xlu0 %v35, 110
  %v408 = vpop.permute.xlu0 %407
  %409 = vrot.lane.b32.xlu0 %v28, 110
  %v410 = vpop.permute.xlu0 %409
  %411 = vrot.lane.b32.xlu0 %v36, 110
  %v412 = vpop.permute.xlu0 %411
  %413 = vrot.lane.b32.xlu0 %v29, 110
  %v414 = vpop.permute.xlu0 %413
  %415 = vrot.lane.b32.xlu0 %v37, 110
  %v416 = vpop.permute.xlu0 %415
  %vm417 = vcmp.lt.s32.totalorder %v206, 110
  %v418 = vsel %vm417, %v414, %v416
  %v419 = vsel %vm417, %v412, %v414
  %v420 = vsel %vm417, %v410, %v412
  %v421 = vsel %vm417, %v408, %v410
  %v422 = vsel %vm417, %v406, %v408
  %v423 = vsel %vm417, %v416, %v406
  %v430 = vrot.slane %v422, 4
  %v431 = vrot.slane %v421, 4
  %v432 = vrot.slane %v420, 4
  %v433 = vrot.slane %v419, 4
  %v434 = vrot.slane %v418, 4
  %v435 = vrot.slane %v423, 4
  %442 = vst [vmem:[#allocation2 + $0x90] sm:$0xf0] %v430
  %443 = vst [vmem:[#allocation2 + $0x98] sm:$0xf0] %v431
  %444 = vst [vmem:[#allocation2 + $0xa0] sm:$0xf0] %v432
  %445 = vst [vmem:[#allocation2 + $0xa8] sm:$0xf0] %v433
  %446 = vst [vmem:[#allocation2 + $0xb0] sm:$0xf0] %v434
  %447 = vst [vmem:[#allocation2 + $0xb8] sm:$0xf0] %v435
  %448 = vrot.lane.b32.xlu0 %v27, 109
  %v449 = vpop.permute.xlu0 %448
  %450 = vrot.lane.b32.xlu0 %v35, 109
  %v451 = vpop.permute.xlu0 %450
  %452 = vrot.lane.b32.xlu0 %v28, 109
  %v453 = vpop.permute.xlu0 %452
  %454 = vrot.lane.b32.xlu0 %v36, 109
  %v455 = vpop.permute.xlu0 %454
  %456 = vrot.lane.b32.xlu0 %v29, 109
  %v457 = vpop.permute.xlu0 %456
  %458 = vrot.lane.b32.xlu0 %v37, 109
  %v459 = vpop.permute.xlu0 %458
  %vm460 = vcmp.lt.s32.totalorder %v206, 109
  %v461 = vsel %vm460, %v457, %v459
  %v462 = vsel %vm460, %v455, %v457
  %v463 = vsel %vm460, %v453, %v455
  %v464 = vsel %vm460, %v451, %v453
  %v465 = vsel %vm460, %v449, %v451
  %v466 = vsel %vm460, %v459, %v449
  %467 = vst [vmem:[#allocation2 + $0xc0] sm:$0xf] %v465
  %468 = vst [vmem:[#allocation2 + $0xc8] sm:$0xf] %v464
  %469 = vst [vmem:[#allocation2 + $0xd0] sm:$0xf] %v463
  %470 = vst [vmem:[#allocation2 + $0xd8] sm:$0xf] %v462
  %471 = vst [vmem:[#allocation2 + $0xe0] sm:$0xf] %v461
  %472 = vst [vmem:[#allocation2 + $0xe8] sm:$0xf] %v466
  %v473 = vld [vmem:[%s2] sm:$0xf]
  %v474 = vld [vmem:[#allocation2] sm:$0xff]
  %v475 = vld [vmem:[#allocation2 + $0x8] sm:$0xff]
  %v476 = vld [vmem:[#allocation2 + $0x10] sm:$0xff]
  %v477 = vld [vmem:[#allocation2 + $0x18] sm:$0xff]
  %v478 = vld [vmem:[#allocation2 + $0x20] sm:$0xff]
  %v479 = vld [vmem:[#allocation2 + $0x28] sm:$0xff]
  %v480 = vld [vmem:[#allocation2 + $0x30] sm:$0xff]
  %v481 = vld [vmem:[#allocation2 + $0x38] sm:$0xff]
  %v482 = vld [vmem:[#allocation2 + $0x40] sm:$0xff]
  %v483 = vld [vmem:[#allocation2 + $0x48] sm:$0xff]
  %v484 = vld [vmem:[#allocation2 + $0x50] sm:$0xff]
  %v485 = vld [vmem:[#allocation2 + $0x58] sm:$0xff]
  %v486 = vld [vmem:[#allocation2 + $0x60] sm:$0xff]
  %v487 = vld [vmem:[#allocation2 + $0x68] sm:$0xff]
  %v488 = vld [vmem:[#allocation2 + $0x70] sm:$0xff]
  %v489 = vld [vmem:[#allocation2 + $0x78] sm:$0xff]
  %v490 = vld [vmem:[#allocation2 + $0x80] sm:$0xff]
  %v491 = vld [vmem:[#allocation2 + $0x88] sm:$0xff]
  %v492 = vld [vmem:[#allocation2 + $0x90] sm:$0xff]
  %v493 = vld [vmem:[#allocation2 + $0x98] sm:$0xff]
  %v494 = vld [vmem:[#allocation2 + $0xa0] sm:$0xff]
  %v495 = vld [vmem:[#allocation2 + $0xa8] sm:$0xff]
  %v496 = vld [vmem:[#allocation2 + $0xb0] sm:$0xff]
  %v497 = vld [vmem:[#allocation2 + $0xb8] sm:$0xff]
  %v498 = vld [vmem:[#allocation2 + $0xc0] sm:$0xf]
  %v499 = vld [vmem:[#allocation2 + $0xc8] sm:$0xf]
  %v500 = vld [vmem:[#allocation2 + $0xd0] sm:$0xf]
  %v501 = vld [vmem:[#allocation2 + $0xd8] sm:$0xf]
  %v502 = vld [vmem:[#allocation2 + $0xe0] sm:$0xf]
  %v503 = vld [vmem:[#allocation2 + $0xe8] sm:$0xf]
  %v504 = vpack.c.bf16 %v480, %v474
  %v505 = vpack.c.bf16 %v481, %v475
  %v506 = vpack.c.bf16 %v482, %v476
  %v507 = vpack.c.bf16 %v483, %v477
  %v508 = vpack.c.bf16 %v484, %v478
  %v509 = vpack.c.bf16 %v485, %v479
  %v510 = vpack.c.bf16 %v492, %v486
  %v511 = vpack.c.bf16 %v493, %v487
  %v512 = vpack.c.bf16 %v494, %v488
  %v513 = vpack.c.bf16 %v495, %v489
  %v514 = vpack.c.bf16 %v496, %v490
  %v515 = vpack.c.bf16 %v497, %v491
  %v516 = vpack.c.bf16 %v498, %v498
  %v517 = vpack.c.bf16 %v499, %v499
  %v518 = vpack.c.bf16 %v500, %v500
  %v519 = vpack.c.bf16 %v501, %v501
  %v520 = vpack.c.bf16 %v502, %v502
  %v521 = vpack.c.bf16 %v503, %v503
  %vm522 = vcmask 293888
  %v524 = vsel %vm522, %v473, 0
  %v527 = vsel %vm51, %v516, 0
  %v530 = vsel %vm51, %v517, 0
  %v533 = vsel %vm51, %v518, 0
  %v536 = vsel %vm51, %v519, 0
  %v539 = vsel %vm51, %v520, 0
  %v542 = vsel %vm51, %v521, 0
  %544 = vmatprep.subr.bf16.mxu0 %v505
  %545 = vmatpush1.bf16.msra.mxu0 %v504
  %546 = vmatprep.subr.bf16.mxu0 %v511
  %547 = vmatpush1.bf16.msra.mxu0 %v510
  %548 = vmatprep.subr.bf16.mxu0 %v530
  %549 = vmatpush1.bf16.msra.mxu0 %v527
  %550 = vmatprep.subr.bf16.mxu0 0
  %551 = vmatpush1.bf16.msra.mxu0 0
  %552 = vmatprep.subr.bf16.mxu0 0
  %553 = vmatpush1.bf16.msra.mxu0 0
  %554 = vmatprep.subr.bf16.mxu0 0
  %555 = vmatpush1.bf16.msra.mxu0 0
  %556 = vmatprep.subr.bf16.mxu0 0
  %557 = vmatpush1.bf16.msra.mxu0 0
  %558 = vmatprep.subr.bf16.mxu0 0
  %559 = vmatpush1.bf16.msra.mxu0 0
  %560 = vmatprep.subr.bf16.mxu0 0
  %561 = vmatpush1.bf16.msra.mxu0 0
  %562 = vmatprep.subr.bf16.mxu0 0
  %563 = vmatpush1.bf16.msra.mxu0 0
  %564 = vmatprep.subr.bf16.mxu0 0
  %565 = vmatpush1.bf16.msra.mxu0 0
  %566 = vmatprep.subr.bf16.mxu0 0
  %567 = vmatpush1.bf16.msra.mxu0 0
  %568 = vmatprep.subr.bf16.mxu0 0
  %569 = vmatpush1.bf16.msra.mxu0 0
  %570 = vmatprep.subr.bf16.mxu0 0
  %571 = vmatpush1.bf16.msra.mxu0 0
  %572 = vmatprep.subr.bf16.mxu0 0
  %573 = vmatpush1.bf16.msra.mxu0 0
  %574 = vmatprep.subr.bf16.mxu0 0
  %575 = vmatpush1.bf16.msra.mxu0 0
  %576 = vmatprep.mubr.bf16.mxu0 0
  %577 = vmatmul.mubr.bf16.gmra.mrb[0].mxu0 %v524
  %v578 = vpop.f32.mrb[0].mxu0
  %v579 = vadd.f32 0.0, %v578
  %v580 = vpop.f32.mrb[0].mxu0
  %v581 = vadd.f32 0.0, %v580
  %v582 = vpop.f32.mrb[0].mxu0
  %v583 = vpop.f32.mrb[0].mxu0
  %584 = vdwg.mxu0
  %585 = vmatprep.subr.bf16.mxu0 %v507
  %586 = vmatpush1.bf16.msra.mxu0 %v506
  %587 = vmatprep.subr.bf16.mxu0 %v513
  %588 = vmatpush1.bf16.msra.mxu0 %v512
  %589 = vmatprep.subr.bf16.mxu0 %v536
  %590 = vmatpush1.bf16.msra.mxu0 %v533
  %591 = vmatprep.subr.bf16.mxu0 0
  %592 = vmatpush1.bf16.msra.mxu0 0
  %593 = vmatprep.subr.bf16.mxu0 0
  %594 = vmatpush1.bf16.msra.mxu0 0
  %595 = vmatprep.subr.bf16.mxu0 0
  %596 = vmatpush1.bf16.msra.mxu0 0
  %597 = vmatprep.subr.bf16.mxu0 0
  %598 = vmatpush1.bf16.msra.mxu0 0
  %599 = vmatprep.subr.bf16.mxu0 0
  %600 = vmatpush1.bf16.msra.mxu0 0
  %601 = vmatprep.subr.bf16.mxu0 0
  %602 = vmatpush1.bf16.msra.mxu0 0
  %603 = vmatprep.subr.bf16.mxu0 0
  %604 = vmatpush1.bf16.msra.mxu0 0
  %605 = vmatprep.subr.bf16.mxu0 0
  %606 = vmatpush1.bf16.msra.mxu0 0
  %607 = vmatprep.subr.bf16.mxu0 0
  %608 = vmatpush1.bf16.msra.mxu0 0
  %609 = vmatprep.subr.bf16.mxu0 0
  %610 = vmatpush1.bf16.msra.mxu0 0
  %611 = vmatprep.subr.bf16.mxu0 0
  %612 = vmatpush1.bf16.msra.mxu0 0
  %613 = vmatprep.subr.bf16.mxu0 0
  %614 = vmatpush1.bf16.msra.mxu0 0
  %615 = vmatprep.subr.bf16.mxu0 0
  %616 = vmatpush1.bf16.msra.mxu0 0
  %617 = vmatprep.mubr.bf16.mxu0 0
  %618 = vmatmul.mubr.bf16.gmra.mrb[0].mxu0 %v524
  %v619 = vpop.f32.mrb[0].mxu0
  %v620 = vadd.f32 0.0, %v619
  %v621 = vpop.f32.mrb[0].mxu0
  %v622 = vadd.f32 0.0, %v621
  %v623 = vpop.f32.mrb[0].mxu0
  %v624 = vpop.f32.mrb[0].mxu0
  %625 = vdwg.mxu0
  %626 = vmatprep.subr.bf16.mxu0 %v509
  %627 = vmatpush1.bf16.msra.mxu0 %v508
  %628 = vmatprep.subr.bf16.mxu0 %v515
  %629 = vmatpush1.bf16.msra.mxu0 %v514
  %630 = vmatprep.subr.bf16.mxu0 %v542
  %631 = vmatpush1.bf16.msra.mxu0 %v539
  %632 = vmatprep.subr.bf16.mxu0 0
  %633 = vmatpush1.bf16.msra.mxu0 0
  %634 = vmatprep.subr.bf16.mxu0 0
  %635 = vmatpush1.bf16.msra.mxu0 0
  %636 = vmatprep.subr.bf16.mxu0 0
  %637 = vmatpush1.bf16.msra.mxu0 0
  %638 = vmatprep.subr.bf16.mxu0 0
  %639 = vmatpush1.bf16.msra.mxu0 0
  %640 = vmatprep.subr.bf16.mxu0 0
  %641 = vmatpush1.bf16.msra.mxu0 0
  %642 = vmatprep.subr.bf16.mxu0 0
  %643 = vmatpush1.bf16.msra.mxu0 0
  %644 = vmatprep.subr.bf16.mxu0 0
  %645 = vmatpush1.bf16.msra.mxu0 0
  %646 = vmatprep.subr.bf16.mxu0 0
  %647 = vmatpush1.bf16.msra.mxu0 0
  %648 = vmatprep.subr.bf16.mxu0 0
  %649 = vmatpush1.bf16.msra.mxu0 0
  %650 = vmatprep.subr.bf16.mxu0 0
  %651 = vmatpush1.bf16.msra.mxu0 0
  %652 = vmatprep.subr.bf16.mxu0 0
  %653 = vmatpush1.bf16.msra.mxu0 0
  %654 = vmatprep.subr.bf16.mxu0 0
  %655 = vmatpush1.bf16.msra.mxu0 0
  %656 = vmatprep.subr.bf16.mxu0 0
  %657 = vmatpush1.bf16.msra.mxu0 0
  %658 = vmatprep.mubr.bf16.mxu0 0
  %659 = vmatmul.mubr.bf16.gmra.mrb[0].mxu0 %v524
  %v660 = vpop.f32.mrb[0].mxu0
  %v661 = vadd.f32 0.0, %v660
  %v662 = vpop.f32.mrb[0].mxu0
  %v663 = vadd.f32 0.0, %v662
  %v664 = vpop.f32.mrb[0].mxu0
  %v665 = vpop.f32.mrb[0].mxu0
  %666 = vdwg.mxu0
  %v668 = vlaneseq
  %v669 = vshrl.u32 %v668, 7
  %v670 = vsub.s32 0, %v669
  %v671 = vrot.slane %v30, %v670
  %v672 = vlaneseq
  %v673 = vshrl.u32 %v672, 7
  %v674 = vsub.s32 1, %v673
  %v675 = vrot.slane %v30, %v674
  %v676 = vlaneseq
  %v677 = vshrl.u32 %v676, 7
  %v678 = vsub.s32 2, %v677
  %v679 = vrot.slane %v30, %v678
  %v680 = vlaneseq
  %v681 = vshrl.u32 %v680, 7
  %v682 = vsub.s32 3, %v681
  %v683 = vrot.slane %v30, %v682
  %v684 = vlaneseq
  %v685 = vshrl.u32 %v684, 7
  %v686 = vsub.s32 4, %v685
  %v687 = vrot.slane %v30, %v686
  %v688 = vlaneseq
  %v689 = vshrl.u32 %v688, 7
  %v690 = vsub.s32 5, %v689
  %v691 = vrot.slane %v30, %v690
  %v698 = vmul.f32 %v579, %v671
  %v699 = vmul.f32 %v581, %v675
  %v700 = vmul.f32 %v620, %v679
  %v701 = vmul.f32 %v622, %v683
  %v702 = vmul.f32 %v661, %v687
  %v703 = vmul.f32 %v663, %v691
  %v704 = vadd.f32 %v698, %v699
  %v705 = vadd.f32 %v704, %v700
  %v706 = vadd.f32 %v705, %v701
  %v707 = vadd.f32 %v706, %v702
  %v708 = vadd.f32 %v707, %v703
  %709 = vadd.xlane.f32.xlu0 %v708
  %v710 = vpop.xlane.xlu0 %709
  %v711 = vmul.f32 %v698, %v698
  %v712 = vmul.f32 %v699, %v699
  %v713 = vmul.f32 %v700, %v700
  %v714 = vmul.f32 %v701, %v701
  %v715 = vmul.f32 %v702, %v702
  %v716 = vmul.f32 %v703, %v703
  %v717 = vadd.f32 %v711, %v712
  %v718 = vadd.f32 %v717, %v713
  %v719 = vadd.f32 %v718, %v714
  %v720 = vadd.f32 %v719, %v715
  %v721 = vadd.f32 %v720, %v716
  %722 = vadd.xlane.f32.xlu0 %v721
  %v723 = vpop.xlane.xlu0 %722
  %v724 = vmul.f32 %v710, 0.001953125
  %v725 = vmul.f32 %v723, 0.001953125
  %v726 = vmul.f32 %v724, %v724
  %v727 = vsub.f32 %v725, %v726
  %v728 = vmax.f32 %v727, 0.0
  %v729 = vld [vmem:[%s5] sm:$0xff]
  %v730 = vadd.f32 %v728, 1e-05
  %v731 = vrsqrt.pop %v730
  %v732 = vmul.f32 %v729, %v731
  %v733 = vmul.f32 %v724, %v732
  %735 = vrot.lane.b32.xlu0 %v733, 1
  %v736 = vpop.permute.xlu0 %735
  %v738 = vsub.f32 %v729, %v736
  %740 = vset.pattern.permute.xlu0 0
  %741 = vperm.xlu0 %740, %v732
  %v742 = vpop.permute.xlu0 %741
  %v744 = vmul.f32 %v579, %v742
  %v745 = vmul.f32 %v581, %v742
  %v746 = vmul.f32 %v620, %v742
  %v747 = vmul.f32 %v622, %v742
  %v748 = vmul.f32 %v661, %v742
  %v749 = vmul.f32 %v663, %v742
  %751 = vset.pattern.permute.xlu0 1
  %752 = vperm.xlu0 %751, %v738
  %v753 = vpop.permute.xlu0 %752
  %v755 = vadd.f32 %v744, %v753
  %v756 = vadd.f32 %v745, %v753
  %v757 = vadd.f32 %v746, %v753
  %v758 = vadd.f32 %v747, %v753
  %v759 = vadd.f32 %v748, %v753
  %v760 = vadd.f32 %v749, %v753
  %vm761 = vcmp.ge.f32.partialorder %v755, 0.0
  %vm762 = vcmp.ge.f32.partialorder %v756, 0.0
  %vm763 = vcmp.ge.f32.partialorder %v757, 0.0
  %vm764 = vcmp.ge.f32.partialorder %v758, 0.0
  %vm765 = vcmp.ge.f32.partialorder %v759, 0.0
  %vm766 = vcmp.ge.f32.partialorder %v760, 0.0
  %v767 = vmul.f32 %v755, 0.2
  %v768 = vmul.f32 %v756, 0.2
  %v769 = vmul.f32 %v757, 0.2
  %v770 = vmul.f32 %v758, 0.2
  %v771 = vmul.f32 %v759, 0.2
  %v772 = vmul.f32 %v760, 0.2
  %v773 = vsel %vm761, %v755, %v767
  %v774 = vsel %vm762, %v756, %v768
  %v775 = vsel %vm763, %v757, %v769
  %v776 = vsel %vm764, %v758, %v770
  %v777 = vsel %vm765, %v759, %v771
  %v778 = vsel %vm766, %v760, %v772
  %v779 = vmul.f32 %v773, %v671
  %v780 = vmul.f32 %v774, %v675
  %v781 = vmul.f32 %v775, %v679
  %v782 = vmul.f32 %v776, %v683
  %v783 = vmul.f32 %v777, %v687
  %v784 = vmul.f32 %v778, %v691
  %785 = vrot.lane.b32.xlu0 %v779, 19
  %v786 = vpop.permute.xlu0 %785
  %787 = vrot.lane.b32.xlu0 %v780, 19
  %v788 = vpop.permute.xlu0 %787
  %789 = vrot.lane.b32.xlu0 %v781, 19
  %v790 = vpop.permute.xlu0 %789
  %791 = vrot.lane.b32.xlu0 %v782, 19
  %v792 = vpop.permute.xlu0 %791
  %793 = vrot.lane.b32.xlu0 %v783, 19
  %v794 = vpop.permute.xlu0 %793
  %795 = vrot.lane.b32.xlu0 %v784, 19
  %v796 = vpop.permute.xlu0 %795
  %v797 = vsel %vm207, %v794, %v796
  %v798 = vsel %vm207, %v792, %v794
  %v799 = vsel %vm207, %v790, %v792
  %v800 = vsel %vm207, %v788, %v790
  %v801 = vsel %vm207, %v786, %v788
  %v802 = vsel %vm207, %v796, %v786
  %803 = vst [vmem:[#allocation3] sm:$0xff] %v802
  %804 = vst [vmem:[#allocation3 + $0x8] sm:$0xff] %v801
  %805 = vst [vmem:[#allocation3 + $0x10] sm:$0xff] %v800
  %806 = vst [vmem:[#allocation3 + $0x18] sm:$0xff] %v799
  %807 = vst [vmem:[#allocation3 + $0x20] sm:$0xff] %v798
  %808 = vst [vmem:[#allocation3 + $0x28] sm:$0xff] %v797
  %809 = vrot.lane.b32.xlu0 %v779, 18
  %v810 = vpop.permute.xlu0 %809
  %811 = vrot.lane.b32.xlu0 %v780, 18
  %v812 = vpop.permute.xlu0 %811
  %813 = vrot.lane.b32.xlu0 %v781, 18
  %v814 = vpop.permute.xlu0 %813
  %815 = vrot.lane.b32.xlu0 %v782, 18
  %v816 = vpop.permute.xlu0 %815
  %817 = vrot.lane.b32.xlu0 %v783, 18
  %v818 = vpop.permute.xlu0 %817
  %819 = vrot.lane.b32.xlu0 %v784, 18
  %v820 = vpop.permute.xlu0 %819
  %v821 = vsel %vm232, %v818, %v820
  %v822 = vsel %vm232, %v816, %v818
  %v823 = vsel %vm232, %v814, %v816
  %v824 = vsel %vm232, %v812, %v814
  %v825 = vsel %vm232, %v810, %v812
  %v826 = vsel %vm232, %v820, %v810
  %827 = vst [vmem:[#allocation3 + $0x30] sm:$0xff] %v826
  %828 = vst [vmem:[#allocation3 + $0x38] sm:$0xff] %v825
  %829 = vst [vmem:[#allocation3 + $0x40] sm:$0xff] %v824
  %830 = vst [vmem:[#allocation3 + $0x48] sm:$0xff] %v823
  %831 = vst [vmem:[#allocation3 + $0x50] sm:$0xff] %v822
  %832 = vst [vmem:[#allocation3 + $0x58] sm:$0xff] %v821
  %833 = vrot.lane.b32.xlu0 %v779, 17
  %v834 = vpop.permute.xlu0 %833
  %835 = vrot.lane.b32.xlu0 %v780, 17
  %v836 = vpop.permute.xlu0 %835
  %837 = vrot.lane.b32.xlu0 %v781, 17
  %v838 = vpop.permute.xlu0 %837
  %839 = vrot.lane.b32.xlu0 %v782, 17
  %v840 = vpop.permute.xlu0 %839
  %841 = vrot.lane.b32.xlu0 %v783, 17
  %v842 = vpop.permute.xlu0 %841
  %843 = vrot.lane.b32.xlu0 %v784, 17
  %v844 = vpop.permute.xlu0 %843
  %v845 = vsel %vm275, %v842, %v844
  %v846 = vsel %vm275, %v840, %v842
  %v847 = vsel %vm275, %v838, %v840
  %v848 = vsel %vm275, %v836, %v838
  %v849 = vsel %vm275, %v834, %v836
  %v850 = vsel %vm275, %v844, %v834
  %851 = vst [vmem:[#allocation3 + $0x60] sm:$0xff] %v850
  %852 = vst [vmem:[#allocation3 + $0x68] sm:$0xff] %v849
  %853 = vst [vmem:[#allocation3 + $0x70] sm:$0xff] %v848
  %854 = vst [vmem:[#allocation3 + $0x78] sm:$0xff] %v847
  %855 = vst [vmem:[#allocation3 + $0x80] sm:$0xff] %v846
  %856 = vst [vmem:[#allocation3 + $0x88] sm:$0xff] %v845
  %857 = vrot.lane.b32.xlu0 %v779, 1
  %v858 = vpop.permute.xlu0 %857
  %859 = vrot.lane.b32.xlu0 %v780, 1
  %v860 = vpop.permute.xlu0 %859
  %861 = vrot.lane.b32.xlu0 %v781, 1
  %v862 = vpop.permute.xlu0 %861
  %863 = vrot.lane.b32.xlu0 %v782, 1
  %v864 = vpop.permute.xlu0 %863
  %865 = vrot.lane.b32.xlu0 %v783, 1
  %v866 = vpop.permute.xlu0 %865
  %867 = vrot.lane.b32.xlu0 %v784, 1
  %v868 = vpop.permute.xlu0 %867
  %v869 = vsel %vm300, %v866, %v868
  %v870 = vsel %vm300, %v864, %v866
  %v871 = vsel %vm300, %v862, %v864
  %v872 = vsel %vm300, %v860, %v862
  %v873 = vsel %vm300, %v858, %v860
  %v874 = vsel %vm300, %v868, %v858
  %875 = vst [vmem:[#allocation3 + $0x90] sm:$0xff] %v874
  %876 = vst [vmem:[#allocation3 + $0x98] sm:$0xff] %v873
  %877 = vst [vmem:[#allocation3 + $0xa0] sm:$0xff] %v872
  %878 = vst [vmem:[#allocation3 + $0xa8] sm:$0xff] %v871
  %879 = vst [vmem:[#allocation3 + $0xb0] sm:$0xff] %v870
  %880 = vst [vmem:[#allocation3 + $0xb8] sm:$0xff] %v869
  %881 = vst [vmem:[#allocation3 + $0xc0] sm:$0xff] %v779
  %882 = vst [vmem:[#allocation3 + $0xc8] sm:$0xff] %v780
  %883 = vst [vmem:[#allocation3 + $0xd0] sm:$0xff] %v781
  %884 = vst [vmem:[#allocation3 + $0xd8] sm:$0xff] %v782
  %885 = vst [vmem:[#allocation3 + $0xe0] sm:$0xff] %v783
  %886 = vst [vmem:[#allocation3 + $0xe8] sm:$0xff] %v784
  %887 = vrot.lane.b32.xlu0 %v779, 127
  %v888 = vpop.permute.xlu0 %887
  %889 = vrot.lane.b32.xlu0 %v780, 127
  %v890 = vpop.permute.xlu0 %889
  %891 = vrot.lane.b32.xlu0 %v781, 127
  %v892 = vpop.permute.xlu0 %891
  %893 = vrot.lane.b32.xlu0 %v782, 127
  %v894 = vpop.permute.xlu0 %893
  %895 = vrot.lane.b32.xlu0 %v783, 127
  %v896 = vpop.permute.xlu0 %895
  %897 = vrot.lane.b32.xlu0 %v784, 127
  %v898 = vpop.permute.xlu0 %897
  %v899 = vsel %vm349, %v896, %v898
  %v900 = vsel %vm349, %v894, %v896
  %v901 = vsel %vm349, %v892, %v894
  %v902 = vsel %vm349, %v890, %v892
  %v903 = vsel %vm349, %v888, %v890
  %v904 = vsel %vm349, %v898, %v888
  %905 = vst [vmem:[#allocation3 + $0xf0] sm:$0xff] %v903
  %906 = vst [vmem:[#allocation3 + $0xf8] sm:$0xff] %v902
  %907 = vst [vmem:[#allocation3 + $0x100] sm:$0xff] %v901
  %908 = vst [vmem:[#allocation3 + $0x108] sm:$0xff] %v900
  %909 = vst [vmem:[#allocation3 + $0x110] sm:$0xff] %v899
  %910 = vst [vmem:[#allocation3 + $0x118] sm:$0xff] %v904
  %911 = vrot.lane.b32.xlu0 %v779, 111
  %v912 = vpop.permute.xlu0 %911
  %913 = vrot.lane.b32.xlu0 %v780, 111
  %v914 = vpop.permute.xlu0 %913
  %915 = vrot.lane.b32.xlu0 %v781, 111
  %v916 = vpop.permute.xlu0 %915
  %917 = vrot.lane.b32.xlu0 %v782, 111
  %v918 = vpop.permute.xlu0 %917
  %919 = vrot.lane.b32.xlu0 %v783, 111
  %v920 = vpop.permute.xlu0 %919
  %921 = vrot.lane.b32.xlu0 %v784, 111
  %v922 = vpop.permute.xlu0 %921
  %v923 = vsel %vm392, %v920, %v922
  %v924 = vsel %vm392, %v918, %v920
  %v925 = vsel %vm392, %v916, %v918
  %v926 = vsel %vm392, %v914, %v916
  %v927 = vsel %vm392, %v912, %v914
  %v928 = vsel %vm392, %v922, %v912
  %929 = vst [vmem:[#allocation3 + $0x120] sm:$0xff] %v927
  %930 = vst [vmem:[#allocation3 + $0x128] sm:$0xff] %v926
  %931 = vst [vmem:[#allocation3 + $0x130] sm:$0xff] %v925
  %932 = vst [vmem:[#allocation3 + $0x138] sm:$0xff] %v924
  %933 = vst [vmem:[#allocation3 + $0x140] sm:$0xff] %v923
  %934 = vst [vmem:[#allocation3 + $0x148] sm:$0xff] %v928
  %935 = vrot.lane.b32.xlu0 %v779, 110
  %v936 = vpop.permute.xlu0 %935
  %937 = vrot.lane.b32.xlu0 %v780, 110
  %v938 = vpop.permute.xlu0 %937
  %939 = vrot.lane.b32.xlu0 %v781, 110
  %v940 = vpop.permute.xlu0 %939
  %941 = vrot.lane.b32.xlu0 %v782, 110
  %v942 = vpop.permute.xlu0 %941
  %943 = vrot.lane.b32.xlu0 %v783, 110
  %v944 = vpop.permute.xlu0 %943
  %945 = vrot.lane.b32.xlu0 %v784, 110
  %v946 = vpop.permute.xlu0 %945
  %v947 = vsel %vm417, %v944, %v946
  %v948 = vsel %vm417, %v942, %v944
  %v949 = vsel %vm417, %v940, %v942
  %v950 = vsel %vm417, %v938, %v940
  %v951 = vsel %vm417, %v936, %v938
  %v952 = vsel %vm417, %v946, %v936
  %953 = vst [vmem:[#allocation3 + $0x150] sm:$0xff] %v951
  %954 = vst [vmem:[#allocation3 + $0x158] sm:$0xff] %v950
  %955 = vst [vmem:[#allocation3 + $0x160] sm:$0xff] %v949
  %956 = vst [vmem:[#allocation3 + $0x168] sm:$0xff] %v948
  %957 = vst [vmem:[#allocation3 + $0x170] sm:$0xff] %v947
  %958 = vst [vmem:[#allocation3 + $0x178] sm:$0xff] %v952
  %959 = vrot.lane.b32.xlu0 %v779, 109
  %v960 = vpop.permute.xlu0 %959
  %961 = vrot.lane.b32.xlu0 %v780, 109
  %v962 = vpop.permute.xlu0 %961
  %963 = vrot.lane.b32.xlu0 %v781, 109
  %v964 = vpop.permute.xlu0 %963
  %965 = vrot.lane.b32.xlu0 %v782, 109
  %v966 = vpop.permute.xlu0 %965
  %967 = vrot.lane.b32.xlu0 %v783, 109
  %v968 = vpop.permute.xlu0 %967
  %969 = vrot.lane.b32.xlu0 %v784, 109
  %v970 = vpop.permute.xlu0 %969
  %v971 = vsel %vm460, %v968, %v970
  %v972 = vsel %vm460, %v966, %v968
  %v973 = vsel %vm460, %v964, %v966
  %v974 = vsel %vm460, %v962, %v964
  %v975 = vsel %vm460, %v960, %v962
  %v976 = vsel %vm460, %v970, %v960
  %977 = vst [vmem:[#allocation3 + $0x180] sm:$0xff] %v975
  %978 = vst [vmem:[#allocation3 + $0x188] sm:$0xff] %v974
  %979 = vst [vmem:[#allocation3 + $0x190] sm:$0xff] %v973
  %980 = vst [vmem:[#allocation3 + $0x198] sm:$0xff] %v972
  %981 = vst [vmem:[#allocation3 + $0x1a0] sm:$0xff] %v971
  %982 = vst [vmem:[#allocation3 + $0x1a8] sm:$0xff] %v976
  %v983 = vld [vmem:[%s3] sm:$0xf]
  %v984 = vld [vmem:[#allocation3] sm:$0xff]
  %v985 = vld [vmem:[#allocation3 + $0x8] sm:$0xff]
  %v986 = vld [vmem:[#allocation3 + $0x10] sm:$0xff]
  %v987 = vld [vmem:[#allocation3 + $0x18] sm:$0xff]
  %v988 = vld [vmem:[#allocation3 + $0x20] sm:$0xff]
  %v989 = vld [vmem:[#allocation3 + $0x28] sm:$0xff]
  %v990 = vld [vmem:[#allocation3 + $0x30] sm:$0xff]
  %v991 = vld [vmem:[#allocation3 + $0x38] sm:$0xff]
  %v992 = vld [vmem:[#allocation3 + $0x40] sm:$0xff]
  %v993 = vld [vmem:[#allocation3 + $0x48] sm:$0xff]
  %v994 = vld [vmem:[#allocation3 + $0x50] sm:$0xff]
  %v995 = vld [vmem:[#allocation3 + $0x58] sm:$0xff]
  %v996 = vld [vmem:[#allocation3 + $0x60] sm:$0xff]
  %v997 = vld [vmem:[#allocation3 + $0x68] sm:$0xff]
  %v998 = vld [vmem:[#allocation3 + $0x70] sm:$0xff]
  %v999 = vld [vmem:[#allocation3 + $0x78] sm:$0xff]
  %v1000 = vld [vmem:[#allocation3 + $0x80] sm:$0xff]
  %v1001 = vld [vmem:[#allocation3 + $0x88] sm:$0xff]
  %v1002 = vld [vmem:[#allocation3 + $0x90] sm:$0xff]
  %v1003 = vld [vmem:[#allocation3 + $0x98] sm:$0xff]
  %v1004 = vld [vmem:[#allocation3 + $0xa0] sm:$0xff]
  %v1005 = vld [vmem:[#allocation3 + $0xa8] sm:$0xff]
  %v1006 = vld [vmem:[#allocation3 + $0xb0] sm:$0xff]
  %v1007 = vld [vmem:[#allocation3 + $0xb8] sm:$0xff]
  %v1008 = vld [vmem:[#allocation3 + $0xc0] sm:$0xff]
  %v1009 = vld [vmem:[#allocation3 + $0xc8] sm:$0xff]
  %v1010 = vld [vmem:[#allocation3 + $0xd0] sm:$0xff]
  %v1011 = vld [vmem:[#allocation3 + $0xd8] sm:$0xff]
  %v1012 = vld [vmem:[#allocation3 + $0xe0] sm:$0xff]
  %v1013 = vld [vmem:[#allocation3 + $0xe8] sm:$0xff]
  %v1014 = vld [vmem:[#allocation3 + $0xf0] sm:$0xff]
  %v1015 = vld [vmem:[#allocation3 + $0xf8] sm:$0xff]
  %v1016 = vld [vmem:[#allocation3 + $0x100] sm:$0xff]
  %v1017 = vld [vmem:[#allocation3 + $0x108] sm:$0xff]
  %v1018 = vld [vmem:[#allocation3 + $0x110] sm:$0xff]
  %v1019 = vld [vmem:[#allocation3 + $0x118] sm:$0xff]
  %v1020 = vld [vmem:[#allocation3 + $0x120] sm:$0xff]
  %v1021 = vld [vmem:[#allocation3 + $0x128] sm:$0xff]
  %v1022 = vld [vmem:[#allocation3 + $0x130] sm:$0xff]
  %v1023 = vld [vmem:[#allocation3 + $0x138] sm:$0xff]
  %v1024 = vld [vmem:[#allocation3 + $0x140] sm:$0xff]
  %v1025 = vld [vmem:[#allocation3 + $0x148] sm:$0xff]
  %v1026 = vld [vmem:[#allocation3 + $0x150] sm:$0xff]
  %v1027 = vld [vmem:[#allocation3 + $0x158] sm:$0xff]
  %v1028 = vld [vmem:[#allocation3 + $0x160] sm:$0xff]
  %v1029 = vld [vmem:[#allocation3 + $0x168] sm:$0xff]
  %v1030 = vld [vmem:[#allocation3 + $0x170] sm:$0xff]
  %v1031 = vld [vmem:[#allocation3 + $0x178] sm:$0xff]
  %v1032 = vld [vmem:[#allocation3 + $0x180] sm:$0xff]
  %v1033 = vld [vmem:[#allocation3 + $0x188] sm:$0xff]
  %v1034 = vld [vmem:[#allocation3 + $0x190] sm:$0xff]
  %v1035 = vld [vmem:[#allocation3 + $0x198] sm:$0xff]
  %v1036 = vld [vmem:[#allocation3 + $0x1a0] sm:$0xff]
  %v1037 = vld [vmem:[#allocation3 + $0x1a8] sm:$0xff]
  %v1038 = vpack.c.bf16 %v990, %v984
  %v1039 = vpack.c.bf16 %v991, %v985
  %v1040 = vpack.c.bf16 %v992, %v986
  %v1041 = vpack.c.bf16 %v993, %v987
  %v1042 = vpack.c.bf16 %v994, %v988
  %v1043 = vpack.c.bf16 %v995, %v989
  %v1044 = vpack.c.bf16 %v1002, %v996
  %v1045 = vpack.c.bf16 %v1003, %v997
  %v1046 = vpack.c.bf16 %v1004, %v998
  %v1047 = vpack.c.bf16 %v1005, %v999
  %v1048 = vpack.c.bf16 %v1006, %v1000
  %v1049 = vpack.c.bf16 %v1007, %v1001
  %v1050 = vpack.c.bf16 %v1014, %v1008
  %v1051 = vpack.c.bf16 %v1015, %v1009
  %v1052 = vpack.c.bf16 %v1016, %v1010
  %v1053 = vpack.c.bf16 %v1017, %v1011
  %v1054 = vpack.c.bf16 %v1018, %v1012
  %v1055 = vpack.c.bf16 %v1019, %v1013
  %v1056 = vpack.c.bf16 %v1026, %v1020
  %v1057 = vpack.c.bf16 %v1027, %v1021
  %v1058 = vpack.c.bf16 %v1028, %v1022
  %v1059 = vpack.c.bf16 %v1029, %v1023
  %v1060 = vpack.c.bf16 %v1030, %v1024
  %v1061 = vpack.c.bf16 %v1031, %v1025
  %v1062 = vpack.c.bf16 %v1032, %v1032
  %v1063 = vpack.c.bf16 %v1033, %v1033
  %v1064 = vpack.c.bf16 %v1034, %v1034
  %v1065 = vpack.c.bf16 %v1035, %v1035
  %v1066 = vpack.c.bf16 %v1036, %v1036
  %v1067 = vpack.c.bf16 %v1037, %v1037
  %vm1068 = vcmask 588800
  %v1070 = vsel %vm1068, %v983, 0
  %vm1072 = vcmask 1043456
  %v1074 = vsel %vm1072, %v1062, 0
  %v1077 = vsel %vm1072, %v1063, 0
  %v1080 = vsel %vm1072, %v1064, 0
  %v1083 = vsel %vm1072, %v1065, 0
  %v1086 = vsel %vm1072, %v1066, 0
  %v1089 = vsel %vm1072, %v1067, 0
  %1091 = vmatprep.subr.bf16.mxu0 %v1039
  %1092 = vmatpush1.bf16.msra.mxu0 %v1038
  %1093 = vmatprep.subr.bf16.mxu0 %v1045
  %1094 = vmatpush1.bf16.msra.mxu0 %v1044
  %1095 = vmatprep.subr.bf16.mxu0 %v1051
  %1096 = vmatpush1.bf16.msra.mxu0 %v1050
  %1097 = vmatprep.subr.bf16.mxu0 %v1057
  %1098 = vmatpush1.bf16.msra.mxu0 %v1056
  %1099 = vmatprep.subr.bf16.mxu0 %v1077
  %1100 = vmatpush1.bf16.msra.mxu0 %v1074
  %1101 = vmatprep.subr.bf16.mxu0 0
  %1102 = vmatpush1.bf16.msra.mxu0 0
  %1103 = vmatprep.subr.bf16.mxu0 0
  %1104 = vmatpush1.bf16.msra.mxu0 0
  %1105 = vmatprep.subr.bf16.mxu0 0
  %1106 = vmatpush1.bf16.msra.mxu0 0
  %1107 = vmatprep.subr.bf16.mxu0 0
  %1108 = vmatpush1.bf16.msra.mxu0 0
  %1109 = vmatprep.subr.bf16.mxu0 0
  %1110 = vmatpush1.bf16.msra.mxu0 0
  %1111 = vmatprep.subr.bf16.mxu0 0
  %1112 = vmatpush1.bf16.msra.mxu0 0
  %1113 = vmatprep.subr.bf16.mxu0 0
  %1114 = vmatpush1.bf16.msra.mxu0 0
  %1115 = vmatprep.subr.bf16.mxu0 0
  %1116 = vmatpush1.bf16.msra.mxu0 0
  %1117 = vmatprep.subr.bf16.mxu0 0
  %1118 = vmatpush1.bf16.msra.mxu0 0
  %1119 = vmatprep.subr.bf16.mxu0 0
  %1120 = vmatpush1.bf16.msra.mxu0 0
  %1121 = vmatprep.subr.bf16.mxu0 0
  %1122 = vmatpush1.bf16.msra.mxu0 0
  %1123 = vmatprep.mubr.bf16.mxu0 0
  %1124 = vmatmul.mubr.bf16.gmra.mrb[0].mxu0 %v1070
  %v1125 = vpop.f32.mrb[0].mxu0
  %v1126 = vadd.f32 0.0, %v1125
  %v1127 = vpop.f32.mrb[0].mxu0
  %v1128 = vadd.f32 0.0, %v1127
  %v1129 = vpop.f32.mrb[0].mxu0
  %v1130 = vpop.f32.mrb[0].mxu0
  %1131 = vdwg.mxu0
  %1132 = vmatprep.subr.bf16.mxu0 %v1041
  %1133 = vmatpush1.bf16.msra.mxu0 %v1040
  %1134 = vmatprep.subr.bf16.mxu0 %v1047
  %1135 = vmatpush1.bf16.msra.mxu0 %v1046
  %1136 = vmatprep.subr.bf16.mxu0 %v1053
  %1137 = vmatpush1.bf16.msra.mxu0 %v1052
  %1138 = vmatprep.subr.bf16.mxu0 %v1059
  %1139 = vmatpush1.bf16.msra.mxu0 %v1058
  %1140 = vmatprep.subr.bf16.mxu0 %v1083
  %1141 = vmatpush1.bf16.msra.mxu0 %v1080
  %1142 = vmatprep.subr.bf16.mxu0 0
  %1143 = vmatpush1.bf16.msra.mxu0 0
  %1144 = vmatprep.subr.bf16.mxu0 0
  %1145 = vmatpush1.bf16.msra.mxu0 0
  %1146 = vmatprep.subr.bf16.mxu0 0
  %1147 = vmatpush1.bf16.msra.mxu0 0
  %1148 = vmatprep.subr.bf16.mxu0 0
  %1149 = vmatpush1.bf16.msra.mxu0 0
  %1150 = vmatprep.subr.bf16.mxu0 0
  %1151 = vmatpush1.bf16.msra.mxu0 0
  %1152 = vmatprep.subr.bf16.mxu0 0
  %1153 = vmatpush1.bf16.msra.mxu0 0
  %1154 = vmatprep.subr.bf16.mxu0 0
  %1155 = vmatpush1.bf16.msra.mxu0 0
  %1156 = vmatprep.subr.bf16.mxu0 0
  %1157 = vmatpush1.bf16.msra.mxu0 0
  %1158 = vmatprep.subr.bf16.mxu0 0
  %1159 = vmatpush1.bf16.msra.mxu0 0
  %1160 = vmatprep.subr.bf16.mxu0 0
  %1161 = vmatpush1.bf16.msra.mxu0 0
  %1162 = vmatprep.subr.bf16.mxu0 0
  %1163 = vmatpush1.bf16.msra.mxu0 0
  %1164 = vmatprep.mubr.bf16.mxu0 0
  %1165 = vmatmul.mubr.bf16.gmra.mrb[0].mxu0 %v1070
  %v1166 = vpop.f32.mrb[0].mxu0
  %v1167 = vadd.f32 0.0, %v1166
  %v1168 = vpop.f32.mrb[0].mxu0
  %v1169 = vadd.f32 0.0, %v1168
  %v1170 = vpop.f32.mrb[0].mxu0
  %v1171 = vpop.f32.mrb[0].mxu0
  %1172 = vdwg.mxu0
  %1173 = vmatprep.subr.bf16.mxu0 %v1043
  %1174 = vmatpush1.bf16.msra.mxu0 %v1042
  %1175 = vmatprep.subr.bf16.mxu0 %v1049
  %1176 = vmatpush1.bf16.msra.mxu0 %v1048
  %1177 = vmatprep.subr.bf16.mxu0 %v1055
  %1178 = vmatpush1.bf16.msra.mxu0 %v1054
  %1179 = vmatprep.subr.bf16.mxu0 %v1061
  %1180 = vmatpush1.bf16.msra.mxu0 %v1060
  %1181 = vmatprep.subr.bf16.mxu0 %v1089
  %1182 = vmatpush1.bf16.msra.mxu0 %v1086
  %1183 = vmatprep.subr.bf16.mxu0 0
  %1184 = vmatpush1.bf16.msra.mxu0 0
  %1185 = vmatprep.subr.bf16.mxu0 0
  %1186 = vmatpush1.bf16.msra.mxu0 0
  %1187 = vmatprep.subr.bf16.mxu0 0
  %1188 = vmatpush1.bf16.msra.mxu0 0
  %1189 = vmatprep.subr.bf16.mxu0 0
  %1190 = vmatpush1.bf16.msra.mxu0 0
  %1191 = vmatprep.subr.bf16.mxu0 0
  %1192 = vmatpush1.bf16.msra.mxu0 0
  %1193 = vmatprep.subr.bf16.mxu0 0
  %1194 = vmatpush1.bf16.msra.mxu0 0
  %1195 = vmatprep.subr.bf16.mxu0 0
  %1196 = vmatpush1.bf16.msra.mxu0 0
  %1197 = vmatprep.subr.bf16.mxu0 0
  %1198 = vmatpush1.bf16.msra.mxu0 0
  %1199 = vmatprep.subr.bf16.mxu0 0
  %1200 = vmatpush1.bf16.msra.mxu0 0
  %1201 = vmatprep.subr.bf16.mxu0 0
  %1202 = vmatpush1.bf16.msra.mxu0 0
  %1203 = vmatprep.subr.bf16.mxu0 0
  %1204 = vmatpush1.bf16.msra.mxu0 0
  %1205 = vmatprep.mubr.bf16.mxu0 0
  %1206 = vmatmul.mubr.bf16.gmra.mrb[0].mxu0 %v1070
  %v1207 = vpop.f32.mrb[0].mxu0
  %v1208 = vadd.f32 0.0, %v1207
  %v1209 = vpop.f32.mrb[0].mxu0
  %v1210 = vadd.f32 0.0, %v1209
  %v1211 = vpop.f32.mrb[0].mxu0
  %v1212 = vpop.f32.mrb[0].mxu0
  %1213 = vdwg.mxu0
  %v1214 = vmul.f32 %v1126, %v671
  %v1215 = vmul.f32 %v1128, %v675
  %v1216 = vmul.f32 %v1167, %v679
  %v1217 = vmul.f32 %v1169, %v683
  %v1218 = vmul.f32 %v1208, %v687
  %v1219 = vmul.f32 %v1210, %v691
  %v1220 = vadd.f32 %v1214, %v1215
  %v1221 = vadd.f32 %v1220, %v1216
  %v1222 = vadd.f32 %v1221, %v1217
  %v1223 = vadd.f32 %v1222, %v1218
  %v1224 = vadd.f32 %v1223, %v1219
  %1225 = vadd.xlane.f32.xlu0 %v1224
  %v1226 = vpop.xlane.xlu0 %1225
  %v1227 = vmul.f32 %v1214, %v1214
  %v1228 = vmul.f32 %v1215, %v1215
  %v1229 = vmul.f32 %v1216, %v1216
  %v1230 = vmul.f32 %v1217, %v1217
  %v1231 = vmul.f32 %v1218, %v1218
  %v1232 = vmul.f32 %v1219, %v1219
  %v1233 = vadd.f32 %v1227, %v1228
  %v1234 = vadd.f32 %v1233, %v1229
  %v1235 = vadd.f32 %v1234, %v1230
  %v1236 = vadd.f32 %v1235, %v1231
  %v1237 = vadd.f32 %v1236, %v1232
  %1238 = vadd.xlane.f32.xlu0 %v1237
  %v1239 = vpop.xlane.xlu0 %1238
  %v1240 = vmul.f32 %v1226, 0.001953125
  %v1241 = vmul.f32 %v1239, 0.001953125
  %v1242 = vmul.f32 %v1240, %v1240
  %v1243 = vsub.f32 %v1241, %v1242
  %v1244 = vmax.f32 %v1243, 0.0
  %v1245 = vld [vmem:[%s6] sm:$0xff]
  %v1246 = vadd.f32 %v1244, 1e-05
  %v1247 = vrsqrt.pop %v1246
  %v1248 = vmul.f32 %v1245, %v1247
  %v1249 = vmul.f32 %v1240, %v1248
  %1251 = vrot.lane.b32.xlu0 %v1249, 1
  %v1252 = vpop.permute.xlu0 %1251
  %v1254 = vsub.f32 %v1245, %v1252
  %1256 = vset.pattern.permute.xlu0 0
  %1257 = vperm.xlu0 %1256, %v1248
  %v1258 = vpop.permute.xlu0 %1257
  %v1260 = vmul.f32 %v1126, %v1258
  %v1261 = vmul.f32 %v1128, %v1258
  %v1262 = vmul.f32 %v1167, %v1258
  %v1263 = vmul.f32 %v1169, %v1258
  %v1264 = vmul.f32 %v1208, %v1258
  %v1265 = vmul.f32 %v1210, %v1258
  %1267 = vset.pattern.permute.xlu0 1
  %1268 = vperm.xlu0 %1267, %v1254
  %v1269 = vpop.permute.xlu0 %1268
  %v1271 = vadd.f32 %v1260, %v1269
  %v1272 = vadd.f32 %v1261, %v1269
  %v1273 = vadd.f32 %v1262, %v1269
  %v1274 = vadd.f32 %v1263, %v1269
  %v1275 = vadd.f32 %v1264, %v1269
  %v1276 = vadd.f32 %v1265, %v1269
  %v1277 = vadd.f32 %v1271, %v105
  %v1278 = vadd.f32 %v1272, %v107
  %v1279 = vadd.f32 %v1273, %v146
  %v1280 = vadd.f32 %v1274, %v148
  %v1281 = vadd.f32 %v1275, %v187
  %v1282 = vadd.f32 %v1276, %v189
  %vm1283 = vcmp.ge.f32.partialorder %v1277, 0.0
  %vm1284 = vcmp.ge.f32.partialorder %v1278, 0.0
  %vm1285 = vcmp.ge.f32.partialorder %v1279, 0.0
  %vm1286 = vcmp.ge.f32.partialorder %v1280, 0.0
  %vm1287 = vcmp.ge.f32.partialorder %v1281, 0.0
  %vm1288 = vcmp.ge.f32.partialorder %v1282, 0.0
  %v1289 = vmul.f32 %v1277, 0.2
  %v1290 = vmul.f32 %v1278, 0.2
  %v1291 = vmul.f32 %v1279, 0.2
  %v1292 = vmul.f32 %v1280, 0.2
  %v1293 = vmul.f32 %v1281, 0.2
  %v1294 = vmul.f32 %v1282, 0.2
  %v1295 = vsel %vm1283, %v1277, %v1289
  %v1296 = vsel %vm1284, %v1278, %v1290
  %v1297 = vsel %vm1285, %v1279, %v1291
  %v1298 = vsel %vm1286, %v1280, %v1292
  %v1299 = vsel %vm1287, %v1281, %v1293
  %v1300 = vsel %vm1288, %v1282, %v1294
  %v1301 = vtanh.pop %v1295
  %v1302 = vtanh.pop %v1296
  %v1303 = vtanh.pop %v1297
  %v1304 = vtanh.pop %v1298
  %v1305 = vtanh.pop %v1299
  %v1306 = vtanh.pop %v1300
  %1307 = vst [vmem:[%s7] sm:$0xff] %v1301
  %1308 = vst [vmem:[%s7 + $0x8] sm:$0xff] %v1302
  %1309 = vst [vmem:[%s7 + $0x10] sm:$0xff] %v1303
  %1310 = vst [vmem:[%s7 + $0x18] sm:$0xff] %v1304
  %1311 = vst [vmem:[%s7 + $0x20] sm:$0xff] %v1305
  %1312 = vst [vmem:[%s7 + $0x28] sm:$0xff] %v1306
  // Predicated region
  $region30: #{residual_block_forward.1} parent=0 // pred_check
    _
  $region31: #{residual_block_forward.1} parent=0 // pred_check_branch
    %1314 = sbr.rel (0) target = $region33
  $region32: #{residual_block_forward.1} parent=0 // pred_region
    _
  $region33: #{residual_block_forward.1} parent=0 // pred_fallthru
    _
  // Predicated region
  $region34: #{residual_block_forward.1} parent=0 // pred_check
    _
  $region35: #{residual_block_forward.1} parent=0 // pred_check_branch
    %1316 = sbr.rel (0) target = $region37
  $region36: #{residual_block_forward.1} parent=0 // pred_region
    _
  $region37: #{residual_block_forward.1} parent=0 // pred_fallthru
    _

</llo_original>
